<compile_context>
chip_gen: v6e
topology: v6e:2x2x1
jax: 0.10.0
libtpu: 0.0.40
codegen_flags: <defaults>
</compile_context>

<pallas_src>
import math

import jax
import jax.numpy as jnp
from jax.experimental import pallas as pl
from jax.experimental.pallas import tpu as pltpu  # noqa: F401  (TPU backend)


def make_lstm_encoder_kernel(T, B, B_pad, H):
    """Single-invocation LSTM-encoder kernel (whole recurrence in one call).

    Expects gate columns already permuted to [i, f, o, g] (so one sigmoid
    covers the contiguous [0:3H] range) and the batch padded to B_pad rows.
    """

    def kernel(x_ref, wih_ref, whh_ref, b_ref, h_out_ref, c_out_ref):
        # ---- Hoisted input projection (off the serial critical path) -------
        # gates_x[t*Bp:(t+1)*Bp] = x_t @ W_ih^T + (b_ih + b_hh), computed as
        # ONE (T*Bp, I) @ (I, 4H) matmul instead of T tiny K=5 matmuls.
        gates_x = (jnp.dot(x_ref[...], wih_ref[...],
                           preferred_element_type=jnp.float32)
                   + b_ref[...])                               # (T*Bp, 4H) f32

        whh = whh_ref[...]                                     # (H, 4H)

        h = jnp.zeros((B_pad, H), jnp.float32)
        c = jnp.zeros((B_pad, H), jnp.float32)

        # ---- Serial recurrence: only h_{t-1} @ W_hh^T stays in the loop -----
        # T is a small static constant; a Python loop is the fully unrolled
        # recurrence and keeps every slice static and sublane-tile-aligned
        # (B_pad is a multiple of 8), so slices are zero-cost views.
        for t in range(T):
            gates = gates_x[t * B_pad:(t + 1) * B_pad, :] + jnp.dot(
                h.astype(whh.dtype), whh, preferred_element_type=jnp.float32)

            # Permuted gate order [i, f, o, g]: one sigmoid over the
            # contiguous first 3H lanes, one tanh for g.
            sig = jax.nn.sigmoid(gates[:, 0:3 * H])
            i_g = sig[:, 0:H]
            f_g = sig[:, H:2 * H]
            o_g = sig[:, 2 * H:3 * H]
            g_g = jnp.tanh(gates[:, 3 * H:4 * H])

            c = f_g * c + i_g * g_g
            h = o_g * jnp.tanh(c)

        # Drop the zero-padded batch rows at the single final store.
        h_out_ref[...] = h[:B, :].astype(h_out_ref.dtype)
        c_out_ref[...] = c[:B, :].astype(c_out_ref.dtype)

    return kernel


def encoder_forward(x, w_ih, w_hh, b_ih, b_hh, mxu_dtype=jnp.float32):
    """x: (T, B, I) float32 (PyTorch nn.LSTM layout). Returns (hidden, cell),
    each (1, B, H), matching `output, (hidden, cell) = lstm(x)`.

    mxu_dtype: set to jnp.bfloat16 on v6e/v7x for the fast bf16 MXU path
    (accumulation + elementwise stay f32). Default f32 matches the reference.
    """
    T, B, I = x.shape
    H = w_ih.shape[0] // 4

    # Pre-transpose weights to (I, 4H)/(H, 4H) for row-major MXU matmuls,
    # permute gate columns [i, f, g, o] -> [i, f, o, g] so i/f/o sigmoids fuse
    # into one EUP launch per step, and fold the two biases into one row.
    def permute_gates(w_t):                              # w_t: (., 4H) cols ifgo
        return jnp.concatenate(
            [w_t[:, 0:2 * H], w_t[:, 3 * H:4 * H], w_t[:, 2 * H:3 * H]], axis=1)

    wih_t = permute_gates(jnp.transpose(w_ih)).astype(mxu_dtype)   # (I, 4H)
    whh_t = permute_gates(jnp.transpose(w_hh)).astype(mxu_dtype)   # (H, 4H)
    bias = permute_gates((b_ih + b_hh).reshape(1, 4 * H)).astype(jnp.float32)

    # Pad batch to a multiple of 8 sublanes so each per-step slice of the
    # hoisted projection is tile-aligned and the state is whole vregs.
    B_pad = ((B + 7) // 8) * 8
    if B_pad != B:
        x = jnp.pad(x, ((0, 0), (0, B_pad - B), (0, 0)))
    x2d = x.reshape(T * B_pad, I).astype(mxu_dtype)                # (T*Bp, I)

    kernel = make_lstm_encoder_kernel(T, B, B_pad, H)

    # No grid, no BlockSpecs: everything (x2d ~1.3 KiB, weights ~264 KiB) fits
    # VMEM on every generation, is DMA'd once, and the whole recurrence runs
    # in a single invocation -- no per-step grid/DMA bookkeeping.
    # TODO(synk): if this is ever run with a large batch on v7x, shard the
    # batch (never the time axis) across the two TensorCores.
    hidden, cell = pl.pallas_call(
        kernel,
        out_shape=(jax.ShapeDtypeStruct((B, H), jnp.float32),
                   jax.ShapeDtypeStruct((B, H), jnp.float32)),
    )(x2d, wih_t, whh_t, bias)

    # PyTorch returns (n_layers * num_directions, B, H) = (1, B, H)
    return hidden[None, ...], cell[None, ...]


def encoder_reference(x, w_ih, w_hh, b_ih, b_hh):
    """Pure-JAX reference (PyTorch LSTM semantics, original [i,f,g,o] order)."""
    T, B, I = x.shape
    H = w_hh.shape[1]

    def step(carry, x_t):
        h, c = carry
        gates = x_t @ w_ih.T + h @ w_hh.T + b_ih + b_hh
        i_g = jax.nn.sigmoid(gates[:, 0 * H:1 * H])
        f_g = jax.nn.sigmoid(gates[:, 1 * H:2 * H])
        g_g = jnp.tanh(gates[:, 2 * H:3 * H])
        o_g = jax.nn.sigmoid(gates[:, 3 * H:4 * H])
        c_new = f_g * c + i_g * g_g
        h_new = o_g * jnp.tanh(c_new)
        return (h_new, c_new), None

    h0 = jnp.zeros((B, H), jnp.float32)
    c0 = jnp.zeros((B, H), jnp.float32)
    (h, c), _ = jax.lax.scan(step, (h0, c0), x)
    return h[None, ...], c[None, ...]


if __name__ == "__main__":
    INPUT_SIZE = 5
    HIDDEN_SIZE = 128
    SEQ_LEN = 8
    BATCH = 2

    key = jax.random.PRNGKey(0)
    k_x, k_wih, k_whh, k_bih, k_bhh = jax.random.split(key, 5)

    # Deterministic parameter init (PyTorch LSTM default: U(-1/sqrt(H), 1/sqrt(H)))
    bound = 1.0 / math.sqrt(HIDDEN_SIZE)
    w_ih = jax.random.uniform(k_wih, (4 * HIDDEN_SIZE, INPUT_SIZE),
                              jnp.float32, -bound, bound)
    w_hh = jax.random.uniform(k_whh, (4 * HIDDEN_SIZE, HIDDEN_SIZE),
                              jnp.float32, -bound, bound)
    b_ih = jax.random.uniform(k_bih, (4 * HIDDEN_SIZE,), jnp.float32, -bound, bound)
    b_hh = jax.random.uniform(k_bhh, (4 * HIDDEN_SIZE,), jnp.float32, -bound, bound)

    x = jax.random.normal(k_x, (SEQ_LEN, BATCH, INPUT_SIZE), jnp.float32)

    hidden, cell = encoder_forward(x, w_ih, w_hh, b_ih, b_hh)
    jax.block_until_ready((hidden, cell))

    h_ref, c_ref = encoder_reference(x, w_ih, w_hh, b_ih, b_hh)
    assert hidden.shape == (1, BATCH, HIDDEN_SIZE)
    assert cell.shape == (1, BATCH, HIDDEN_SIZE)
    assert jnp.allclose(hidden, h_ref, atol=1e-5, rtol=1e-5)
    assert jnp.allclose(cell, c_ref, atol=1e-5, rtol=1e-5)

    print("KERNEL_OK")
</pallas_src>

<mosaic_0001>
module attributes {stable_mosaic.version = 11 : i64} {
  func.func @kernel(%arg0: memref<64x5xf32, #tpu.memory_space<vmem>>, %arg1: memref<5x512xf32, #tpu.memory_space<vmem>>, %arg2: memref<128x512xf32, #tpu.memory_space<vmem>>, %arg3: memref<1x512xf32, #tpu.memory_space<vmem>>, %arg4: memref<2x128xf32, #tpu.memory_space<vmem>>, %arg5: memref<2x128xf32, #tpu.memory_space<vmem>>) attributes {dimension_semantics = [], scalar_prefetch = 0 : i64, scratch_operands = 0 : i64, tpu.core_type = #tpu.core_type<tc>} {
    %c0 = arith.constant 0 : index
    %c0_0 = arith.constant 0 : index
    %0 = vector.load %arg0[%c0, %c0_0] : memref<64x5xf32, #tpu.memory_space<vmem>>, vector<64x5xf32>
    %c0_1 = arith.constant 0 : index
    %c0_2 = arith.constant 0 : index
    %1 = vector.load %arg1[%c0_1, %c0_2] : memref<5x512xf32, #tpu.memory_space<vmem>>, vector<5x512xf32>
    %cst = arith.constant dense<0.000000e+00> : vector<64x512xf32>
    %2 = tpu.matmul %0, %1, %cst {dimension_numbers = #tpu.dot_dimension_numbers<[1], [0], [0], [1], [0, 0, 1, 1], [], []>} : vector<64x5xf32>, vector<5x512xf32>, vector<64x512xf32> -> vector<64x512xf32>
    %c0_3 = arith.constant 0 : index
    %c0_4 = arith.constant 0 : index
    %3 = vector.load %arg3[%c0_3, %c0_4] : memref<1x512xf32, #tpu.memory_space<vmem>>, vector<1x512xf32>
    %4 = vector.broadcast %3 : vector<1x512xf32> to vector<64x512xf32>
    %5 = arith.addf %2, %4 : vector<64x512xf32>
    %c0_5 = arith.constant 0 : index
    %c0_6 = arith.constant 0 : index
    %6 = vector.load %arg2[%c0_5, %c0_6] : memref<128x512xf32, #tpu.memory_space<vmem>>, vector<128x512xf32>
    %cst_7 = arith.constant 0.000000e+00 : f32
    %7 = vector.broadcast %cst_7 : f32 to vector<8x128xf32>
    %cst_8 = arith.constant 0.000000e+00 : f32
    %8 = vector.broadcast %cst_8 : f32 to vector<8x128xf32>
    %9 = vector.extract_strided_slice %5 {offsets = [0, 0], sizes = [8, 512], strides = [1, 1]} : vector<64x512xf32> to vector<8x512xf32>
    %cst_9 = arith.constant dense<0.000000e+00> : vector<8x512xf32>
    %10 = tpu.matmul %7, %6, %cst_9 {dimension_numbers = #tpu.dot_dimension_numbers<[1], [0], [0], [1], [0, 0, 1, 1], [], []>} : vector<8x128xf32>, vector<128x512xf32>, vector<8x512xf32> -> vector<8x512xf32>
    %11 = arith.addf %9, %10 : vector<8x512xf32>
    %12 = vector.extract_strided_slice %11 {offsets = [0, 0], sizes = [8, 384], strides = [1, 1]} : vector<8x512xf32> to vector<8x384xf32>
    %13 = arith.negf %12 : vector<8x384xf32>
    %14 = math.exp %13 : vector<8x384xf32>
    %cst_10 = arith.constant 1.000000e+00 : f32
    %15 = vector.broadcast %cst_10 : f32 to vector<8x384xf32>
    %16 = arith.addf %15, %14 : vector<8x384xf32>
    %17 = arith.divf %15, %16 : vector<8x384xf32>
    %18 = vector.extract_strided_slice %17 {offsets = [0, 0], sizes = [8, 128], strides = [1, 1]} : vector<8x384xf32> to vector<8x128xf32>
    %19 = vector.extract_strided_slice %17 {offsets = [0, 128], sizes = [8, 128], strides = [1, 1]} : vector<8x384xf32> to vector<8x128xf32>
    %20 = vector.extract_strided_slice %17 {offsets = [0, 256], sizes = [8, 128], strides = [1, 1]} : vector<8x384xf32> to vector<8x128xf32>
    %21 = vector.extract_strided_slice %11 {offsets = [0, 384], sizes = [8, 128], strides = [1, 1]} : vector<8x512xf32> to vector<8x128xf32>
    %22 = math.tanh %21 : vector<8x128xf32>
    %23 = arith.mulf %19, %8 : vector<8x128xf32>
    %24 = arith.mulf %18, %22 : vector<8x128xf32>
    %25 = arith.addf %23, %24 : vector<8x128xf32>
    %26 = math.tanh %25 : vector<8x128xf32>
    %27 = arith.mulf %20, %26 : vector<8x128xf32>
    %28 = vector.extract_strided_slice %5 {offsets = [8, 0], sizes = [8, 512], strides = [1, 1]} : vector<64x512xf32> to vector<8x512xf32>
    %cst_11 = arith.constant dense<0.000000e+00> : vector<8x512xf32>
    %29 = tpu.matmul %27, %6, %cst_11 {dimension_numbers = #tpu.dot_dimension_numbers<[1], [0], [0], [1], [0, 0, 1, 1], [], []>} : vector<8x128xf32>, vector<128x512xf32>, vector<8x512xf32> -> vector<8x512xf32>
    %30 = arith.addf %28, %29 : vector<8x512xf32>
    %31 = vector.extract_strided_slice %30 {offsets = [0, 0], sizes = [8, 384], strides = [1, 1]} : vector<8x512xf32> to vector<8x384xf32>
    %32 = arith.negf %31 : vector<8x384xf32>
    %33 = math.exp %32 : vector<8x384xf32>
    %cst_12 = arith.constant 1.000000e+00 : f32
    %34 = vector.broadcast %cst_12 : f32 to vector<8x384xf32>
    %35 = arith.addf %34, %33 : vector<8x384xf32>
    %36 = arith.divf %34, %35 : vector<8x384xf32>
    %37 = vector.extract_strided_slice %36 {offsets = [0, 0], sizes = [8, 128], strides = [1, 1]} : vector<8x384xf32> to vector<8x128xf32>
    %38 = vector.extract_strided_slice %36 {offsets = [0, 128], sizes = [8, 128], strides = [1, 1]} : vector<8x384xf32> to vector<8x128xf32>
    %39 = vector.extract_strided_slice %36 {offsets = [0, 256], sizes = [8, 128], strides = [1, 1]} : vector<8x384xf32> to vector<8x128xf32>
    %40 = vector.extract_strided_slice %30 {offsets = [0, 384], sizes = [8, 128], strides = [1, 1]} : vector<8x512xf32> to vector<8x128xf32>
    %41 = math.tanh %40 : vector<8x128xf32>
    %42 = arith.mulf %38, %25 : vector<8x128xf32>
    %43 = arith.mulf %37, %41 : vector<8x128xf32>
    %44 = arith.addf %42, %43 : vector<8x128xf32>
    %45 = math.tanh %44 : vector<8x128xf32>
    %46 = arith.mulf %39, %45 : vector<8x128xf32>
    %47 = vector.extract_strided_slice %5 {offsets = [16, 0], sizes = [8, 512], strides = [1, 1]} : vector<64x512xf32> to vector<8x512xf32>
    %cst_13 = arith.constant dense<0.000000e+00> : vector<8x512xf32>
    %48 = tpu.matmul %46, %6, %cst_13 {dimension_numbers = #tpu.dot_dimension_numbers<[1], [0], [0], [1], [0, 0, 1, 1], [], []>} : vector<8x128xf32>, vector<128x512xf32>, vector<8x512xf32> -> vector<8x512xf32>
    %49 = arith.addf %47, %48 : vector<8x512xf32>
    %50 = vector.extract_strided_slice %49 {offsets = [0, 0], sizes = [8, 384], strides = [1, 1]} : vector<8x512xf32> to vector<8x384xf32>
    %51 = arith.negf %50 : vector<8x384xf32>
    %52 = math.exp %51 : vector<8x384xf32>
    %cst_14 = arith.constant 1.000000e+00 : f32
    %53 = vector.broadcast %cst_14 : f32 to vector<8x384xf32>
    %54 = arith.addf %53, %52 : vector<8x384xf32>
    %55 = arith.divf %53, %54 : vector<8x384xf32>
    %56 = vector.extract_strided_slice %55 {offsets = [0, 0], sizes = [8, 128], strides = [1, 1]} : vector<8x384xf32> to vector<8x128xf32>
    %57 = vector.extract_strided_slice %55 {offsets = [0, 128], sizes = [8, 128], strides = [1, 1]} : vector<8x384xf32> to vector<8x128xf32>
    %58 = vector.extract_strided_slice %55 {offsets = [0, 256], sizes = [8, 128], strides = [1, 1]} : vector<8x384xf32> to vector<8x128xf32>
    %59 = vector.extract_strided_slice %49 {offsets = [0, 384], sizes = [8, 128], strides = [1, 1]} : vector<8x512xf32> to vector<8x128xf32>
    %60 = math.tanh %59 : vector<8x128xf32>
    %61 = arith.mulf %57, %44 : vector<8x128xf32>
    %62 = arith.mulf %56, %60 : vector<8x128xf32>
    %63 = arith.addf %61, %62 : vector<8x128xf32>
    %64 = math.tanh %63 : vector<8x128xf32>
    %65 = arith.mulf %58, %64 : vector<8x128xf32>
    %66 = vector.extract_strided_slice %5 {offsets = [24, 0], sizes = [8, 512], strides = [1, 1]} : vector<64x512xf32> to vector<8x512xf32>
    %cst_15 = arith.constant dense<0.000000e+00> : vector<8x512xf32>
    %67 = tpu.matmul %65, %6, %cst_15 {dimension_numbers = #tpu.dot_dimension_numbers<[1], [0], [0], [1], [0, 0, 1, 1], [], []>} : vector<8x128xf32>, vector<128x512xf32>, vector<8x512xf32> -> vector<8x512xf32>
    %68 = arith.addf %66, %67 : vector<8x512xf32>
    %69 = vector.extract_strided_slice %68 {offsets = [0, 0], sizes = [8, 384], strides = [1, 1]} : vector<8x512xf32> to vector<8x384xf32>
    %70 = arith.negf %69 : vector<8x384xf32>
    %71 = math.exp %70 : vector<8x384xf32>
    %cst_16 = arith.constant 1.000000e+00 : f32
    %72 = vector.broadcast %cst_16 : f32 to vector<8x384xf32>
    %73 = arith.addf %72, %71 : vector<8x384xf32>
    %74 = arith.divf %72, %73 : vector<8x384xf32>
    %75 = vector.extract_strided_slice %74 {offsets = [0, 0], sizes = [8, 128], strides = [1, 1]} : vector<8x384xf32> to vector<8x128xf32>
    %76 = vector.extract_strided_slice %74 {offsets = [0, 128], sizes = [8, 128], strides = [1, 1]} : vector<8x384xf32> to vector<8x128xf32>
    %77 = vector.extract_strided_slice %74 {offsets = [0, 256], sizes = [8, 128], strides = [1, 1]} : vector<8x384xf32> to vector<8x128xf32>
    %78 = vector.extract_strided_slice %68 {offsets = [0, 384], sizes = [8, 128], strides = [1, 1]} : vector<8x512xf32> to vector<8x128xf32>
    %79 = math.tanh %78 : vector<8x128xf32>
    %80 = arith.mulf %76, %63 : vector<8x128xf32>
    %81 = arith.mulf %75, %79 : vector<8x128xf32>
    %82 = arith.addf %80, %81 : vector<8x128xf32>
    %83 = math.tanh %82 : vector<8x128xf32>
    %84 = arith.mulf %77, %83 : vector<8x128xf32>
    %85 = vector.extract_strided_slice %5 {offsets = [32, 0], sizes = [8, 512], strides = [1, 1]} : vector<64x512xf32> to vector<8x512xf32>
    %cst_17 = arith.constant dense<0.000000e+00> : vector<8x512xf32>
    %86 = tpu.matmul %84, %6, %cst_17 {dimension_numbers = #tpu.dot_dimension_numbers<[1], [0], [0], [1], [0, 0, 1, 1], [], []>} : vector<8x128xf32>, vector<128x512xf32>, vector<8x512xf32> -> vector<8x512xf32>
    %87 = arith.addf %85, %86 : vector<8x512xf32>
    %88 = vector.extract_strided_slice %87 {offsets = [0, 0], sizes = [8, 384], strides = [1, 1]} : vector<8x512xf32> to vector<8x384xf32>
    %89 = arith.negf %88 : vector<8x384xf32>
    %90 = math.exp %89 : vector<8x384xf32>
    %cst_18 = arith.constant 1.000000e+00 : f32
    %91 = vector.broadcast %cst_18 : f32 to vector<8x384xf32>
    %92 = arith.addf %91, %90 : vector<8x384xf32>
    %93 = arith.divf %91, %92 : vector<8x384xf32>
    %94 = vector.extract_strided_slice %93 {offsets = [0, 0], sizes = [8, 128], strides = [1, 1]} : vector<8x384xf32> to vector<8x128xf32>
    %95 = vector.extract_strided_slice %93 {offsets = [0, 128], sizes = [8, 128], strides = [1, 1]} : vector<8x384xf32> to vector<8x128xf32>
    %96 = vector.extract_strided_slice %93 {offsets = [0, 256], sizes = [8, 128], strides = [1, 1]} : vector<8x384xf32> to vector<8x128xf32>
    %97 = vector.extract_strided_slice %87 {offsets = [0, 384], sizes = [8, 128], strides = [1, 1]} : vector<8x512xf32> to vector<8x128xf32>
    %98 = math.tanh %97 : vector<8x128xf32>
    %99 = arith.mulf %95, %82 : vector<8x128xf32>
    %100 = arith.mulf %94, %98 : vector<8x128xf32>
    %101 = arith.addf %99, %100 : vector<8x128xf32>
    %102 = math.tanh %101 : vector<8x128xf32>
    %103 = arith.mulf %96, %102 : vector<8x128xf32>
    %104 = vector.extract_strided_slice %5 {offsets = [40, 0], sizes = [8, 512], strides = [1, 1]} : vector<64x512xf32> to vector<8x512xf32>
    %cst_19 = arith.constant dense<0.000000e+00> : vector<8x512xf32>
    %105 = tpu.matmul %103, %6, %cst_19 {dimension_numbers = #tpu.dot_dimension_numbers<[1], [0], [0], [1], [0, 0, 1, 1], [], []>} : vector<8x128xf32>, vector<128x512xf32>, vector<8x512xf32> -> vector<8x512xf32>
    %106 = arith.addf %104, %105 : vector<8x512xf32>
    %107 = vector.extract_strided_slice %106 {offsets = [0, 0], sizes = [8, 384], strides = [1, 1]} : vector<8x512xf32> to vector<8x384xf32>
    %108 = arith.negf %107 : vector<8x384xf32>
    %109 = math.exp %108 : vector<8x384xf32>
    %cst_20 = arith.constant 1.000000e+00 : f32
    %110 = vector.broadcast %cst_20 : f32 to vector<8x384xf32>
    %111 = arith.addf %110, %109 : vector<8x384xf32>
    %112 = arith.divf %110, %111 : vector<8x384xf32>
    %113 = vector.extract_strided_slice %112 {offsets = [0, 0], sizes = [8, 128], strides = [1, 1]} : vector<8x384xf32> to vector<8x128xf32>
    %114 = vector.extract_strided_slice %112 {offsets = [0, 128], sizes = [8, 128], strides = [1, 1]} : vector<8x384xf32> to vector<8x128xf32>
    %115 = vector.extract_strided_slice %112 {offsets = [0, 256], sizes = [8, 128], strides = [1, 1]} : vector<8x384xf32> to vector<8x128xf32>
    %116 = vector.extract_strided_slice %106 {offsets = [0, 384], sizes = [8, 128], strides = [1, 1]} : vector<8x512xf32> to vector<8x128xf32>
    %117 = math.tanh %116 : vector<8x128xf32>
    %118 = arith.mulf %114, %101 : vector<8x128xf32>
    %119 = arith.mulf %113, %117 : vector<8x128xf32>
    %120 = arith.addf %118, %119 : vector<8x128xf32>
    %121 = math.tanh %120 : vector<8x128xf32>
    %122 = arith.mulf %115, %121 : vector<8x128xf32>
    %123 = vector.extract_strided_slice %5 {offsets = [48, 0], sizes = [8, 512], strides = [1, 1]} : vector<64x512xf32> to vector<8x512xf32>
    %cst_21 = arith.constant dense<0.000000e+00> : vector<8x512xf32>
    %124 = tpu.matmul %122, %6, %cst_21 {dimension_numbers = #tpu.dot_dimension_numbers<[1], [0], [0], [1], [0, 0, 1, 1], [], []>} : vector<8x128xf32>, vector<128x512xf32>, vector<8x512xf32> -> vector<8x512xf32>
    %125 = arith.addf %123, %124 : vector<8x512xf32>
    %126 = vector.extract_strided_slice %125 {offsets = [0, 0], sizes = [8, 384], strides = [1, 1]} : vector<8x512xf32> to vector<8x384xf32>
    %127 = arith.negf %126 : vector<8x384xf32>
    %128 = math.exp %127 : vector<8x384xf32>
    %cst_22 = arith.constant 1.000000e+00 : f32
    %129 = vector.broadcast %cst_22 : f32 to vector<8x384xf32>
    %130 = arith.addf %129, %128 : vector<8x384xf32>
    %131 = arith.divf %129, %130 : vector<8x384xf32>
    %132 = vector.extract_strided_slice %131 {offsets = [0, 0], sizes = [8, 128], strides = [1, 1]} : vector<8x384xf32> to vector<8x128xf32>
    %133 = vector.extract_strided_slice %131 {offsets = [0, 128], sizes = [8, 128], strides = [1, 1]} : vector<8x384xf32> to vector<8x128xf32>
    %134 = vector.extract_strided_slice %131 {offsets = [0, 256], sizes = [8, 128], strides = [1, 1]} : vector<8x384xf32> to vector<8x128xf32>
    %135 = vector.extract_strided_slice %125 {offsets = [0, 384], sizes = [8, 128], strides = [1, 1]} : vector<8x512xf32> to vector<8x128xf32>
    %136 = math.tanh %135 : vector<8x128xf32>
    %137 = arith.mulf %133, %120 : vector<8x128xf32>
    %138 = arith.mulf %132, %136 : vector<8x128xf32>
    %139 = arith.addf %137, %138 : vector<8x128xf32>
    %140 = math.tanh %139 : vector<8x128xf32>
    %141 = arith.mulf %134, %140 : vector<8x128xf32>
    %142 = vector.extract_strided_slice %5 {offsets = [56, 0], sizes = [8, 512], strides = [1, 1]} : vector<64x512xf32> to vector<8x512xf32>
    %cst_23 = arith.constant dense<0.000000e+00> : vector<8x512xf32>
    %143 = tpu.matmul %141, %6, %cst_23 {dimension_numbers = #tpu.dot_dimension_numbers<[1], [0], [0], [1], [0, 0, 1, 1], [], []>} : vector<8x128xf32>, vector<128x512xf32>, vector<8x512xf32> -> vector<8x512xf32>
    %144 = arith.addf %142, %143 : vector<8x512xf32>
    %145 = vector.extract_strided_slice %144 {offsets = [0, 0], sizes = [8, 384], strides = [1, 1]} : vector<8x512xf32> to vector<8x384xf32>
    %146 = arith.negf %145 : vector<8x384xf32>
    %147 = math.exp %146 : vector<8x384xf32>
    %cst_24 = arith.constant 1.000000e+00 : f32
    %148 = vector.broadcast %cst_24 : f32 to vector<8x384xf32>
    %149 = arith.addf %148, %147 : vector<8x384xf32>
    %150 = arith.divf %148, %149 : vector<8x384xf32>
    %151 = vector.extract_strided_slice %150 {offsets = [0, 0], sizes = [8, 128], strides = [1, 1]} : vector<8x384xf32> to vector<8x128xf32>
    %152 = vector.extract_strided_slice %150 {offsets = [0, 128], sizes = [8, 128], strides = [1, 1]} : vector<8x384xf32> to vector<8x128xf32>
    %153 = vector.extract_strided_slice %150 {offsets = [0, 256], sizes = [8, 128], strides = [1, 1]} : vector<8x384xf32> to vector<8x128xf32>
    %154 = vector.extract_strided_slice %144 {offsets = [0, 384], sizes = [8, 128], strides = [1, 1]} : vector<8x512xf32> to vector<8x128xf32>
    %155 = math.tanh %154 : vector<8x128xf32>
    %156 = arith.mulf %152, %139 : vector<8x128xf32>
    %157 = arith.mulf %151, %155 : vector<8x128xf32>
    %158 = arith.addf %156, %157 : vector<8x128xf32>
    %159 = math.tanh %158 : vector<8x128xf32>
    %160 = arith.mulf %153, %159 : vector<8x128xf32>
    %161 = vector.extract_strided_slice %160 {offsets = [0, 0], sizes = [2, 128], strides = [1, 1]} : vector<8x128xf32> to vector<2x128xf32>
    %c0_25 = arith.constant 0 : index
    %c0_26 = arith.constant 0 : index
    %162 = vector.load %arg4[%c0_25, %c0_26] : memref<2x128xf32, #tpu.memory_space<vmem>>, vector<2x128xf32>
    tpu.vector_store %arg4[%c0_25, %c0_26], %161 {strides = array<i32>} : memref<2x128xf32, #tpu.memory_space<vmem>>, vector<2x128xf32>,
    %163 = vector.extract_strided_slice %158 {offsets = [0, 0], sizes = [2, 128], strides = [1, 1]} : vector<8x128xf32> to vector<2x128xf32>
    %c0_27 = arith.constant 0 : index
    %c0_28 = arith.constant 0 : index
    %164 = vector.load %arg5[%c0_27, %c0_28] : memref<2x128xf32, #tpu.memory_space<vmem>>, vector<2x128xf32>
    tpu.vector_store %arg5[%c0_27, %c0_28], %163 {strides = array<i32>} : memref<2x128xf32, #tpu.memory_space<vmem>>, vector<2x128xf32>,
    return
  }
}

</mosaic_0001>

<llo_original>
// kernel: tpu_custom_call.1
$region0: #{tpu_custom_call.1}
  #allocation0 [shape = 'u32[]', space=smem, size = 0x4, offset = 0x4, fixed_abs, tag = 'smem constant byte address 0x4 - core index']
  #allocation1 [shape = 'u32[144,128]{1,0:T(1,128)}', space=vmem, size = 0x12000, scoped, tag = 'internal scratch']
  %s0 = inlined_call_operand.vmem [shape: f32[64,5], index: 0, kind: input, shape index: {}]
  %s1 = inlined_call_operand.vmem [shape: f32[5,512], index: 1, kind: input, shape index: {}]
  %s2 = inlined_call_operand.hbm [shape: f32[128,512], index: 2, kind: input, shape index: {}]
  %s3 = inlined_call_operand.vmem [shape: f32[1,512], index: 3, kind: input, shape index: {}]
  %s4 = inlined_call_operand.hbm [shape: f32[2,128], index: 4, kind: output, shape index: {0}]
  %s5 = inlined_call_operand.hbm [shape: f32[2,128], index: 5, kind: output, shape index: {1}]
  %6 = xla_tuple %s4, %s5
  %s7 = sld [smem:[#allocation0]]
  $region38: #{tpu_custom_call.1} parent=0
    _
  %s9 = ssub.s32 1, %s7
  %s10 = scalar_select 0, %s9, %s7
  $region1: #{tpu_custom_call.1} parent=0
    #allocation2 [shape = 'u8[262144]{0}', space=vmem, size = 0x40000, scoped, tag = 'input window, operand 2, single buffered']
    #allocation3 [shape = 's32[1]{0}', space=sflag, size = 0x4, scoped, tag = 'scoped memory for tpu_custom_call.1']
    #allocation4 [shape = 's32[1]{0}', space=sflag, size = 0x4, scoped, tag = 'scoped memory for tpu_custom_call.1']
    #allocation5 [shape = 'u8[1024]{0}', space=vmem, size = 0x400, scoped, tag = 'output window, operand 0, single buffered']
    #allocation6 [shape = 'u8[1024]{0}', space=vmem, size = 0x400, scoped, tag = 'output window, operand 1, single buffered']
    #allocation7 [shape = 's32[1]{0}', space=sflag, size = 0x4, scoped, tag = 'scoped memory for tpu_custom_call.1']
    %11 = vsyncpa [#allocation3], 0
    %12 = vsyncpa [#allocation4], 0
    %13 = vsyncpa [#allocation7], 0
    // Predicated region
    $region2: #{tpu_custom_call.1} parent=1 // pred_check
      _
    $region3: #{tpu_custom_call.1} parent=1 // pred_check_branch
      %15 = sbr.rel (0) target = $region5
    $region4: #{tpu_custom_call.1} parent=1 // pred_region
      _
    $region5: #{tpu_custom_call.1} parent=1 // pred_fallthru
      _
    // Predicated region
    $region6: #{tpu_custom_call.1} parent=1 // pred_check
      _
    $region7: #{tpu_custom_call.1} parent=1 // pred_check_branch
      %17 = sbr.rel (0) target = $region9
    $region8: #{tpu_custom_call.1} parent=1 // pred_region
      _
    $region9: #{tpu_custom_call.1} parent=1 // pred_fallthru
      _
    // Predicated region
    $region10: #{tpu_custom_call.1} parent=1 // pred_check
      _
    $region11: #{tpu_custom_call.1} parent=1 // pred_check_branch
      %19 = sbr.rel (0) target = $region13
    $region12: #{tpu_custom_call.1} parent=1 // pred_region
      %s21 = ssub.s32 8192, 8192
      %22 = vsyncadd [#allocation3], %s21
      %s23 = sshll.u32 [#allocation2], 4
      %s24 = int_to_ptr.vmem [resolvable:$true] %s23
      %29 = dma.hbm_to_vmem [thread:$0]  %s2, 8192, %s24, [#allocation3], 512, 512, 32
    $region13: #{tpu_custom_call.1} parent=1 // pred_fallthru
      _
    // Predicated region
    $region14: #{tpu_custom_call.1} parent=1 // pred_check
      _
    $region15: #{tpu_custom_call.1} parent=1 // pred_check_branch
      %31 = sbr.rel (0) target = $region17
    $region16: #{tpu_custom_call.1} parent=1 // pred_region
      _
    $region17: #{tpu_custom_call.1} parent=1 // pred_fallthru
      _
    // Predicated region
    $region18: #{tpu_custom_call.1} parent=1 // pred_check
      _
    $region19: #{tpu_custom_call.1} parent=1 // pred_check_branch
      %33 = sbr.rel (0) target = $region21
    $region20: #{tpu_custom_call.1} parent=1 // pred_region
      %34 = dma.done [#allocation3], 8192
    $region21: #{tpu_custom_call.1} parent=1 // pred_fallthru
      _
    %v35 = vld [vmem:[%s0] sm:$0xff]
    %v36 = vld [vmem:[%s0 + $0x8] sm:$0xff]
    %v37 = vld [vmem:[%s0 + $0x10] sm:$0xff]
    %v38 = vld [vmem:[%s0 + $0x18] sm:$0xff]
    %v39 = vld [vmem:[%s0 + $0x20] sm:$0xff]
    %v40 = vld [vmem:[%s0 + $0x28] sm:$0xff]
    %v41 = vld [vmem:[%s0 + $0x30] sm:$0xff]
    %v42 = vld [vmem:[%s0 + $0x38] sm:$0xff]
    %v43 = vld [vmem:[%s1] sm:$0x1f]
    %v44 = vld [vmem:[%s1 + $0x8] sm:$0x1f]
    %v45 = vld [vmem:[%s1 + $0x10] sm:$0x1f]
    %v46 = vld [vmem:[%s1 + $0x18] sm:$0x1f]
    %v47 = vld [vmem:[%s3] sm:$0xf]
    %v49 = vlaneseq
    %v50 = vshrl.u32 %v49, 7
    %v51 = vsub.s32 0, %v50
    %v52 = vrot.slane %v47, %v51
    %v53 = vlaneseq
    %v54 = vshrl.u32 %v53, 7
    %v55 = vsub.s32 1, %v54
    %v56 = vrot.slane %v47, %v55
    %v57 = vlaneseq
    %v58 = vshrl.u32 %v57, 7
    %v59 = vsub.s32 2, %v58
    %v60 = vrot.slane %v47, %v59
    %v61 = vlaneseq
    %v62 = vshrl.u32 %v61, 7
    %v63 = vsub.s32 3, %v62
    %v64 = vrot.slane %v47, %v63
    %vm69 = vcmask 39936
    %v71 = vsel %vm69, %v35, 0
    %v74 = vsel %vm69, %v36, 0
    %v77 = vsel %vm69, %v37, 0
    %v80 = vsel %vm69, %v38, 0
    %v83 = vsel %vm69, %v39, 0
    %v86 = vsel %vm69, %v40, 0
    %v89 = vsel %vm69, %v41, 0
    %v92 = vsel %vm69, %v42, 0
    %vm94 = vcmask 1044480
    %v96 = vsel %vm94, %v43, 0
    %v99 = vsel %vm94, %v44, 0
    %v102 = vsel %vm94, %v45, 0
    %v105 = vsel %vm94, %v46, 0
    %107 = vmatprep.subr.mxu0 0.0
    %108 = vmatpush1.msra.mxu0 0.0
    %109 = vmatprep.subr.mxu0 0.0
    %110 = vmatpush1.msra.mxu0 0.0
    %111 = vmatprep.subr.mxu0 0.0
    %112 = vmatpush1.msra.mxu0 0.0
    %113 = vmatprep.subr.mxu0 0.0
    %114 = vmatpush1.msra.mxu0 0.0
    %115 = vmatprep.subr.mxu0 0.0
    %116 = vmatpush1.msra.mxu0 0.0
    %117 = vmatprep.subr.mxu0 0.0
    %118 = vmatpush1.msra.mxu0 0.0
    %119 = vmatprep.subr.mxu0 0.0
    %120 = vmatpush1.msra.mxu0 0.0
    %121 = vmatprep.subr.mxu0 0.0
    %122 = vmatpush1.msra.mxu0 0.0
    %123 = vmatprep.subr.mxu0 0.0
    %124 = vmatpush1.msra.mxu0 0.0
    %125 = vmatprep.subr.mxu0 0.0
    %126 = vmatpush1.msra.mxu0 0.0
    %127 = vmatprep.subr.mxu0 0.0
    %128 = vmatpush1.msra.mxu0 0.0
    %129 = vmatprep.subr.mxu0 0.0
    %130 = vmatpush1.msra.mxu0 0.0
    %131 = vmatprep.subr.mxu0 0.0
    %132 = vmatpush1.msra.mxu0 0.0
    %133 = vmatprep.subr.mxu0 0.0
    %134 = vmatpush1.msra.mxu0 0.0
    %135 = vmatprep.subr.mxu0 0.0
    %136 = vmatpush1.msra.mxu0 0.0
    %137 = vmatprep.subr.mxu0 %v99
    %138 = vmatpush1.msra.mxu0 %v96
    %139 = vmatprep.subr.mxu0 0.0
    %140 = vmatpush2.msra.mxu0 0.0
    %141 = vmatprep.subr.mxu0 0.0
    %142 = vmatpush2.msra.mxu0 0.0
    %143 = vmatprep.subr.mxu0 0.0
    %144 = vmatpush2.msra.mxu0 0.0
    %145 = vmatprep.subr.mxu0 0.0
    %146 = vmatpush2.msra.mxu0 0.0
    %147 = vmatprep.subr.mxu0 0.0
    %148 = vmatpush2.msra.mxu0 0.0
    %149 = vmatprep.subr.mxu0 0.0
    %150 = vmatpush2.msra.mxu0 0.0
    %151 = vmatprep.subr.mxu0 0.0
    %152 = vmatpush2.msra.mxu0 0.0
    %153 = vmatprep.subr.mxu0 0.0
    %154 = vmatpush2.msra.mxu0 0.0
    %155 = vmatprep.subr.mxu0 0.0
    %156 = vmatpush2.msra.mxu0 0.0
    %157 = vmatprep.subr.mxu0 0.0
    %158 = vmatpush2.msra.mxu0 0.0
    %159 = vmatprep.subr.mxu0 0.0
    %160 = vmatpush2.msra.mxu0 0.0
    %161 = vmatprep.subr.mxu0 0.0
    %162 = vmatpush2.msra.mxu0 0.0
    %163 = vmatprep.subr.mxu0 0.0
    %164 = vmatpush2.msra.mxu0 0.0
    %165 = vmatprep.subr.mxu0 0.0
    %166 = vmatpush2.msra.mxu0 0.0
    %167 = vmatprep.subr.mxu0 0.0
    %168 = vmatpush2.msra.mxu0 0.0
    %169 = vmatprep.subr.mxu0 0.0
    %170 = vmatpush2.msra.mxu0 0.0
    %171 = vmatprep.mubr.f32.mxu0 0.0
    %172 = vmatmul.mubr.f32.gmra.mxu0 %v71
    %v173 = vpop.f32.mrf.mxu0
    %v174 = vadd.f32 %v52, %v173
    %v175 = vpop.f32.mrf.mxu0
    %v176 = vadd.f32 %v56, %v175
    %177 = vmatprep.mubr.f32.mxu0 0.0
    %178 = vmatmul.mubr.f32.gmra.mxu0 %v74
    %v179 = vpop.f32.mrf.mxu0
    %v180 = vadd.f32 %v52, %v179
    %v181 = vpop.f32.mrf.mxu0
    %v182 = vadd.f32 %v56, %v181
    %183 = vmatprep.mubr.f32.mxu0 0.0
    %184 = vmatmul.mubr.f32.gmra.mxu0 %v77
    %v185 = vpop.f32.mrf.mxu0
    %v186 = vadd.f32 %v52, %v185
    %v187 = vpop.f32.mrf.mxu0
    %v188 = vadd.f32 %v56, %v187
    %189 = vmatprep.mubr.f32.mxu0 0.0
    %190 = vmatmul.mubr.f32.gmra.mxu0 %v80
    %v191 = vpop.f32.mrf.mxu0
    %v192 = vadd.f32 %v52, %v191
    %v193 = vpop.f32.mrf.mxu0
    %v194 = vadd.f32 %v56, %v193
    %195 = vmatprep.mubr.f32.mxu0 0.0
    %196 = vmatmul.mubr.f32.gmra.mxu0 %v83
    %v197 = vpop.f32.mrf.mxu0
    %v198 = vadd.f32 %v52, %v197
    %v199 = vpop.f32.mrf.mxu0
    %v200 = vadd.f32 %v56, %v199
    %201 = vmatprep.mubr.f32.mxu0 0.0
    %202 = vmatmul.mubr.f32.gmra.mxu0 %v86
    %v203 = vpop.f32.mrf.mxu0
    %v204 = vadd.f32 %v52, %v203
    %v205 = vpop.f32.mrf.mxu0
    %v206 = vadd.f32 %v56, %v205
    %207 = vmatprep.mubr.f32.mxu0 0.0
    %208 = vmatmul.mubr.f32.gmra.mxu0 %v89
    %v209 = vpop.f32.mrf.mxu0
    %v210 = vadd.f32 %v52, %v209
    %v211 = vpop.f32.mrf.mxu0
    %v212 = vadd.f32 %v56, %v211
    %213 = vmatprep.mubr.f32.mxu0 0.0
    %214 = vmatmul.mubr.f32.gmra.mxu0 %v92
    %v215 = vpop.f32.mrf.mxu0
    %v216 = vadd.f32 %v52, %v215
    %v217 = vpop.f32.mrf.mxu0
    %v218 = vadd.f32 %v56, %v217
    %219 = vdwg.mxu0
    %220 = vmatprep.subr.mxu0 0.0
    %221 = vmatpush1.msra.mxu0 0.0
    %222 = vmatprep.subr.mxu0 0.0
    %223 = vmatpush1.msra.mxu0 0.0
    %224 = vmatprep.subr.mxu0 0.0
    %225 = vmatpush1.msra.mxu0 0.0
    %226 = vmatprep.subr.mxu0 0.0
    %227 = vmatpush1.msra.mxu0 0.0
    %228 = vmatprep.subr.mxu0 0.0
    %229 = vmatpush1.msra.mxu0 0.0
    %230 = vmatprep.subr.mxu0 0.0
    %231 = vmatpush1.msra.mxu0 0.0
    %232 = vmatprep.subr.mxu0 0.0
    %233 = vmatpush1.msra.mxu0 0.0
    %234 = vmatprep.subr.mxu0 0.0
    %235 = vmatpush1.msra.mxu0 0.0
    %236 = vmatprep.subr.mxu0 0.0
    %237 = vmatpush1.msra.mxu0 0.0
    %238 = vmatprep.subr.mxu0 0.0
    %239 = vmatpush1.msra.mxu0 0.0
    %240 = vmatprep.subr.mxu0 0.0
    %241 = vmatpush1.msra.mxu0 0.0
    %242 = vmatprep.subr.mxu0 0.0
    %243 = vmatpush1.msra.mxu0 0.0
    %244 = vmatprep.subr.mxu0 0.0
    %245 = vmatpush1.msra.mxu0 0.0
    %246 = vmatprep.subr.mxu0 0.0
    %247 = vmatpush1.msra.mxu0 0.0
    %248 = vmatprep.subr.mxu0 0.0
    %249 = vmatpush1.msra.mxu0 0.0
    %250 = vmatprep.subr.mxu0 %v105
    %251 = vmatpush1.msra.mxu0 %v102
    %252 = vmatprep.subr.mxu0 0.0
    %253 = vmatpush2.msra.mxu0 0.0
    %254 = vmatprep.subr.mxu0 0.0
    %255 = vmatpush2.msra.mxu0 0.0
    %256 = vmatprep.subr.mxu0 0.0
    %257 = vmatpush2.msra.mxu0 0.0
    %258 = vmatprep.subr.mxu0 0.0
    %259 = vmatpush2.msra.mxu0 0.0
    %260 = vmatprep.subr.mxu0 0.0
    %261 = vmatpush2.msra.mxu0 0.0
    %262 = vmatprep.subr.mxu0 0.0
    %263 = vmatpush2.msra.mxu0 0.0
    %264 = vmatprep.subr.mxu0 0.0
    %265 = vmatpush2.msra.mxu0 0.0
    %266 = vmatprep.subr.mxu0 0.0
    %267 = vmatpush2.msra.mxu0 0.0
    %268 = vmatprep.subr.mxu0 0.0
    %269 = vmatpush2.msra.mxu0 0.0
    %270 = vmatprep.subr.mxu0 0.0
    %271 = vmatpush2.msra.mxu0 0.0
    %272 = vmatprep.subr.mxu0 0.0
    %273 = vmatpush2.msra.mxu0 0.0
    %274 = vmatprep.subr.mxu0 0.0
    %275 = vmatpush2.msra.mxu0 0.0
    %276 = vmatprep.subr.mxu0 0.0
    %277 = vmatpush2.msra.mxu0 0.0
    %278 = vmatprep.subr.mxu0 0.0
    %279 = vmatpush2.msra.mxu0 0.0
    %280 = vmatprep.subr.mxu0 0.0
    %281 = vmatpush2.msra.mxu0 0.0
    %282 = vmatprep.subr.mxu0 0.0
    %283 = vmatpush2.msra.mxu0 0.0
    %284 = vmatprep.mubr.f32.mxu0 0.0
    %285 = vmatmul.mubr.f32.gmra.mxu0 %v71
    %v286 = vpop.f32.mrf.mxu0
    %v287 = vadd.f32 %v60, %v286
    %v288 = vpop.f32.mrf.mxu0
    %v289 = vadd.f32 %v64, %v288
    %290 = vmatprep.mubr.f32.mxu0 0.0
    %291 = vmatmul.mubr.f32.gmra.mxu0 %v74
    %v292 = vpop.f32.mrf.mxu0
    %v293 = vadd.f32 %v60, %v292
    %v294 = vpop.f32.mrf.mxu0
    %v295 = vadd.f32 %v64, %v294
    %296 = vmatprep.mubr.f32.mxu0 0.0
    %297 = vmatmul.mubr.f32.gmra.mxu0 %v77
    %v298 = vpop.f32.mrf.mxu0
    %v299 = vadd.f32 %v60, %v298
    %v300 = vpop.f32.mrf.mxu0
    %v301 = vadd.f32 %v64, %v300
    %302 = vmatprep.mubr.f32.mxu0 0.0
    %303 = vmatmul.mubr.f32.gmra.mxu0 %v80
    %v304 = vpop.f32.mrf.mxu0
    %v305 = vadd.f32 %v60, %v304
    %v306 = vpop.f32.mrf.mxu0
    %v307 = vadd.f32 %v64, %v306
    %308 = vmatprep.mubr.f32.mxu0 0.0
    %309 = vmatmul.mubr.f32.gmra.mxu0 %v83
    %v310 = vpop.f32.mrf.mxu0
    %v311 = vadd.f32 %v60, %v310
    %v312 = vpop.f32.mrf.mxu0
    %v313 = vadd.f32 %v64, %v312
    %314 = vmatprep.mubr.f32.mxu0 0.0
    %315 = vmatmul.mubr.f32.gmra.mxu0 %v86
    %v316 = vpop.f32.mrf.mxu0
    %v317 = vadd.f32 %v60, %v316
    %v318 = vpop.f32.mrf.mxu0
    %v319 = vadd.f32 %v64, %v318
    %320 = vmatprep.mubr.f32.mxu0 0.0
    %321 = vmatmul.mubr.f32.gmra.mxu0 %v89
    %v322 = vpop.f32.mrf.mxu0
    %v323 = vadd.f32 %v60, %v322
    %v324 = vpop.f32.mrf.mxu0
    %v325 = vadd.f32 %v64, %v324
    %326 = vmatprep.mubr.f32.mxu0 0.0
    %327 = vmatmul.mubr.f32.gmra.mxu0 %v92
    %v328 = vpop.f32.mrf.mxu0
    %v329 = vadd.f32 %v60, %v328
    %v330 = vpop.f32.mrf.mxu0
    %v331 = vadd.f32 %v64, %v330
    %332 = vdwg.mxu0
    %v333 = vld [vmem:[#allocation2] sm:$0xff]
    %v334 = vld [vmem:[#allocation2 + $0x8] sm:$0xff]
    %v335 = vld [vmem:[#allocation2 + $0x10] sm:$0xff]
    %v336 = vld [vmem:[#allocation2 + $0x18] sm:$0xff]
    %v337 = vld [vmem:[#allocation2 + $0x20] sm:$0xff]
    %v338 = vld [vmem:[#allocation2 + $0x28] sm:$0xff]
    %v339 = vld [vmem:[#allocation2 + $0x30] sm:$0xff]
    %v340 = vld [vmem:[#allocation2 + $0x38] sm:$0xff]
    %v341 = vld [vmem:[#allocation2 + $0x40] sm:$0xff]
    %v342 = vld [vmem:[#allocation2 + $0x48] sm:$0xff]
    %v343 = vld [vmem:[#allocation2 + $0x50] sm:$0xff]
    %v344 = vld [vmem:[#allocation2 + $0x58] sm:$0xff]
    %v345 = vld [vmem:[#allocation2 + $0x60] sm:$0xff]
    %v346 = vld [vmem:[#allocation2 + $0x68] sm:$0xff]
    %v347 = vld [vmem:[#allocation2 + $0x70] sm:$0xff]
    %v348 = vld [vmem:[#allocation2 + $0x78] sm:$0xff]
    %v349 = vld [vmem:[#allocation2 + $0x80] sm:$0xff]
    %v350 = vld [vmem:[#allocation2 + $0x88] sm:$0xff]
    %v351 = vld [vmem:[#allocation2 + $0x90] sm:$0xff]
    %v352 = vld [vmem:[#allocation2 + $0x98] sm:$0xff]
    %v353 = vld [vmem:[#allocation2 + $0xa0] sm:$0xff]
    %v354 = vld [vmem:[#allocation2 + $0xa8] sm:$0xff]
    %v355 = vld [vmem:[#allocation2 + $0xb0] sm:$0xff]
    %v356 = vld [vmem:[#allocation2 + $0xb8] sm:$0xff]
    %v357 = vld [vmem:[#allocation2 + $0xc0] sm:$0xff]
    %v358 = vld [vmem:[#allocation2 + $0xc8] sm:$0xff]
    %v359 = vld [vmem:[#allocation2 + $0xd0] sm:$0xff]
    %v360 = vld [vmem:[#allocation2 + $0xd8] sm:$0xff]
    %v361 = vld [vmem:[#allocation2 + $0xe0] sm:$0xff]
    %v362 = vld [vmem:[#allocation2 + $0xe8] sm:$0xff]
    %v363 = vld [vmem:[#allocation2 + $0xf0] sm:$0xff]
    %v364 = vld [vmem:[#allocation2 + $0xf8] sm:$0xff]
    %v365 = vld [vmem:[#allocation2 + $0x100] sm:$0xff]
    %v366 = vld [vmem:[#allocation2 + $0x108] sm:$0xff]
    %v367 = vld [vmem:[#allocation2 + $0x110] sm:$0xff]
    %v368 = vld [vmem:[#allocation2 + $0x118] sm:$0xff]
    %v369 = vld [vmem:[#allocation2 + $0x120] sm:$0xff]
    %v370 = vld [vmem:[#allocation2 + $0x128] sm:$0xff]
    %v371 = vld [vmem:[#allocation2 + $0x130] sm:$0xff]
    %v372 = vld [vmem:[#allocation2 + $0x138] sm:$0xff]
    %v373 = vld [vmem:[#allocation2 + $0x140] sm:$0xff]
    %v374 = vld [vmem:[#allocation2 + $0x148] sm:$0xff]
    %v375 = vld [vmem:[#allocation2 + $0x150] sm:$0xff]
    %v376 = vld [vmem:[#allocation2 + $0x158] sm:$0xff]
    %v377 = vld [vmem:[#allocation2 + $0x160] sm:$0xff]
    %v378 = vld [vmem:[#allocation2 + $0x168] sm:$0xff]
    %v379 = vld [vmem:[#allocation2 + $0x170] sm:$0xff]
    %v380 = vld [vmem:[#allocation2 + $0x178] sm:$0xff]
    %v381 = vld [vmem:[#allocation2 + $0x180] sm:$0xff]
    %v382 = vld [vmem:[#allocation2 + $0x188] sm:$0xff]
    %v383 = vld [vmem:[#allocation2 + $0x190] sm:$0xff]
    %v384 = vld [vmem:[#allocation2 + $0x198] sm:$0xff]
    %v385 = vld [vmem:[#allocation2 + $0x1a0] sm:$0xff]
    %v386 = vld [vmem:[#allocation2 + $0x1a8] sm:$0xff]
    %v387 = vld [vmem:[#allocation2 + $0x1b0] sm:$0xff]
    %v388 = vld [vmem:[#allocation2 + $0x1b8] sm:$0xff]
    %v389 = vld [vmem:[#allocation2 + $0x1c0] sm:$0xff]
    %v390 = vld [vmem:[#allocation2 + $0x1c8] sm:$0xff]
    %v391 = vld [vmem:[#allocation2 + $0x1d0] sm:$0xff]
    %v392 = vld [vmem:[#allocation2 + $0x1d8] sm:$0xff]
    %v393 = vld [vmem:[#allocation2 + $0x1e0] sm:$0xff]
    %v394 = vld [vmem:[#allocation2 + $0x1e8] sm:$0xff]
    %v395 = vld [vmem:[#allocation2 + $0x1f0] sm:$0xff]
    %v396 = vld [vmem:[#allocation2 + $0x1f8] sm:$0xff]
    %397 = vmatprep.subr.mxu0 %v394
    %398 = vmatpush1.msra.mxu0 %v393
    %399 = vmatprep.subr.mxu0 %v390
    %400 = vmatpush1.msra.mxu0 %v389
    %401 = vmatprep.subr.mxu0 %v386
    %402 = vmatpush1.msra.mxu0 %v385
    %403 = vmatprep.subr.mxu0 %v382
    %404 = vmatpush1.msra.mxu0 %v381
    %405 = vmatprep.subr.mxu0 %v378
    %406 = vmatpush1.msra.mxu0 %v377
    %407 = vmatprep.subr.mxu0 %v374
    %408 = vmatpush1.msra.mxu0 %v373
    %409 = vmatprep.subr.mxu0 %v370
    %410 = vmatpush1.msra.mxu0 %v369
    %411 = vmatprep.subr.mxu0 %v366
    %412 = vmatpush1.msra.mxu0 %v365
    %413 = vmatprep.subr.mxu0 %v362
    %414 = vmatpush1.msra.mxu0 %v361
    %415 = vmatprep.subr.mxu0 %v358
    %416 = vmatpush1.msra.mxu0 %v357
    %417 = vmatprep.subr.mxu0 %v354
    %418 = vmatpush1.msra.mxu0 %v353
    %419 = vmatprep.subr.mxu0 %v350
    %420 = vmatpush1.msra.mxu0 %v349
    %421 = vmatprep.subr.mxu0 %v346
    %422 = vmatpush1.msra.mxu0 %v345
    %423 = vmatprep.subr.mxu0 %v342
    %424 = vmatpush1.msra.mxu0 %v341
    %425 = vmatprep.subr.mxu0 %v338
    %426 = vmatpush1.msra.mxu0 %v337
    %427 = vmatprep.subr.mxu0 %v334
    %428 = vmatpush1.msra.mxu0 %v333
    %429 = vmatprep.subr.mxu0 0.0
    %430 = vmatpush2.msra.mxu0 0.0
    %431 = vmatprep.subr.mxu0 0.0
    %432 = vmatpush2.msra.mxu0 0.0
    %433 = vmatprep.subr.mxu0 0.0
    %434 = vmatpush2.msra.mxu0 0.0
    %435 = vmatprep.subr.mxu0 0.0
    %436 = vmatpush2.msra.mxu0 0.0
    %437 = vmatprep.subr.mxu0 0.0
    %438 = vmatpush2.msra.mxu0 0.0
    %439 = vmatprep.subr.mxu0 0.0
    %440 = vmatpush2.msra.mxu0 0.0
    %441 = vmatprep.subr.mxu0 0.0
    %442 = vmatpush2.msra.mxu0 0.0
    %443 = vmatprep.subr.mxu0 0.0
    %444 = vmatpush2.msra.mxu0 0.0
    %445 = vmatprep.subr.mxu0 0.0
    %446 = vmatpush2.msra.mxu0 0.0
    %447 = vmatprep.subr.mxu0 0.0
    %448 = vmatpush2.msra.mxu0 0.0
    %449 = vmatprep.subr.mxu0 0.0
    %450 = vmatpush2.msra.mxu0 0.0
    %451 = vmatprep.subr.mxu0 0.0
    %452 = vmatpush2.msra.mxu0 0.0
    %453 = vmatprep.subr.mxu0 0.0
    %454 = vmatpush2.msra.mxu0 0.0
    %455 = vmatprep.subr.mxu0 0.0
    %456 = vmatpush2.msra.mxu0 0.0
    %457 = vmatprep.subr.mxu0 0.0
    %458 = vmatpush2.msra.mxu0 0.0
    %459 = vmatprep.subr.mxu0 0.0
    %460 = vmatpush2.msra.mxu0 0.0
    %461 = vmatprep.mubr.f32.mxu0 0.0
    %462 = vmatmul.mubr.f32.gmra.mxu0 0.0
    %v463 = vpop.f32.mrf.mxu0
    %v464 = vadd.f32 0.0, %v463
    %v465 = vpop.f32.mrf.mxu0
    %v466 = vadd.f32 0.0, %v465
    %467 = vdwg.mxu0
    %468 = vmatprep.subr.mxu0 %v396
    %469 = vmatpush1.msra.mxu0 %v395
    %470 = vmatprep.subr.mxu0 %v392
    %471 = vmatpush1.msra.mxu0 %v391
    %472 = vmatprep.subr.mxu0 %v388
    %473 = vmatpush1.msra.mxu0 %v387
    %474 = vmatprep.subr.mxu0 %v384
    %475 = vmatpush1.msra.mxu0 %v383
    %476 = vmatprep.subr.mxu0 %v380
    %477 = vmatpush1.msra.mxu0 %v379
    %478 = vmatprep.subr.mxu0 %v376
    %479 = vmatpush1.msra.mxu0 %v375
    %480 = vmatprep.subr.mxu0 %v372
    %481 = vmatpush1.msra.mxu0 %v371
    %482 = vmatprep.subr.mxu0 %v368
    %483 = vmatpush1.msra.mxu0 %v367
    %484 = vmatprep.subr.mxu0 %v364
    %485 = vmatpush1.msra.mxu0 %v363
    %486 = vmatprep.subr.mxu0 %v360
    %487 = vmatpush1.msra.mxu0 %v359
    %488 = vmatprep.subr.mxu0 %v356
    %489 = vmatpush1.msra.mxu0 %v355
    %490 = vmatprep.subr.mxu0 %v352
    %491 = vmatpush1.msra.mxu0 %v351
    %492 = vmatprep.subr.mxu0 %v348
    %493 = vmatpush1.msra.mxu0 %v347
    %494 = vmatprep.subr.mxu0 %v344
    %495 = vmatpush1.msra.mxu0 %v343
    %496 = vmatprep.subr.mxu0 %v340
    %497 = vmatpush1.msra.mxu0 %v339
    %498 = vmatprep.subr.mxu0 %v336
    %499 = vmatpush1.msra.mxu0 %v335
    %500 = vmatprep.subr.mxu0 0.0
    %501 = vmatpush2.msra.mxu0 0.0
    %502 = vmatprep.subr.mxu0 0.0
    %503 = vmatpush2.msra.mxu0 0.0
    %504 = vmatprep.subr.mxu0 0.0
    %505 = vmatpush2.msra.mxu0 0.0
    %506 = vmatprep.subr.mxu0 0.0
    %507 = vmatpush2.msra.mxu0 0.0
    %508 = vmatprep.subr.mxu0 0.0
    %509 = vmatpush2.msra.mxu0 0.0
    %510 = vmatprep.subr.mxu0 0.0
    %511 = vmatpush2.msra.mxu0 0.0
    %512 = vmatprep.subr.mxu0 0.0
    %513 = vmatpush2.msra.mxu0 0.0
    %514 = vmatprep.subr.mxu0 0.0
    %515 = vmatpush2.msra.mxu0 0.0
    %516 = vmatprep.subr.mxu0 0.0
    %517 = vmatpush2.msra.mxu0 0.0
    %518 = vmatprep.subr.mxu0 0.0
    %519 = vmatpush2.msra.mxu0 0.0
    %520 = vmatprep.subr.mxu0 0.0
    %521 = vmatpush2.msra.mxu0 0.0
    %522 = vmatprep.subr.mxu0 0.0
    %523 = vmatpush2.msra.mxu0 0.0
    %524 = vmatprep.subr.mxu0 0.0
    %525 = vmatpush2.msra.mxu0 0.0
    %526 = vmatprep.subr.mxu0 0.0
    %527 = vmatpush2.msra.mxu0 0.0
    %528 = vmatprep.subr.mxu0 0.0
    %529 = vmatpush2.msra.mxu0 0.0
    %530 = vmatprep.subr.mxu0 0.0
    %531 = vmatpush2.msra.mxu0 0.0
    %532 = vmatprep.mubr.f32.mxu0 0.0
    %533 = vmatmul.mubr.f32.gmra.mxu0 0.0
    %v534 = vpop.f32.mrf.mxu0
    %v535 = vadd.f32 0.0, %v534
    %v536 = vpop.f32.mrf.mxu0
    %v537 = vadd.f32 0.0, %v536
    %538 = vdwg.mxu0
    %v539 = vadd.f32 %v174, %v464
    %v540 = vadd.f32 %v176, %v466
    %v541 = vadd.f32 %v287, %v535
    %v542 = vadd.f32 %v289, %v537
    %v543 = vxor.u32 %v539, 2147483648
    %v544 = vxor.u32 %v540, 2147483648
    %v545 = vxor.u32 %v541, 2147483648
    %v546 = vmul.f32 %v543, 1.442695
    %v547 = vpow.pop %v546
    %v548 = vmul.f32 %v544, 1.442695
    %v549 = vpow.pop %v548
    %v550 = vmul.f32 %v545, 1.442695
    %v551 = vpow.pop %v550
    %v552 = vadd.f32 %v547, 1.0
    %v553 = vadd.f32 %v549, 1.0
    %v554 = vadd.f32 %v551, 1.0
    %v555 = vrcp.pop %v552
    %v556 = vmul.f32 1.0, %v555
    %v557 = vrcp.pop %v553
    %v558 = vmul.f32 1.0, %v557
    %v559 = vrcp.pop %v554
    %v560 = vmul.f32 1.0, %v559
    %v561 = vtanh.pop %v542
    %v562 = vmul.f32 %v558, 0.0
    %v563 = vmul.f32 %v556, %v561
    %v564 = vadd.f32 %v562, %v563
    %v565 = vtanh.pop %v564
    %v566 = vmul.f32 %v560, %v565
    %567 = vmatprep.subr.mxu0 %v394
    %568 = vmatpush1.msra.mxu0 %v393
    %569 = vmatprep.subr.mxu0 %v390
    %570 = vmatpush1.msra.mxu0 %v389
    %571 = vmatprep.subr.mxu0 %v386
    %572 = vmatpush1.msra.mxu0 %v385
    %573 = vmatprep.subr.mxu0 %v382
    %574 = vmatpush1.msra.mxu0 %v381
    %575 = vmatprep.subr.mxu0 %v378
    %576 = vmatpush1.msra.mxu0 %v377
    %577 = vmatprep.subr.mxu0 %v374
    %578 = vmatpush1.msra.mxu0 %v373
    %579 = vmatprep.subr.mxu0 %v370
    %580 = vmatpush1.msra.mxu0 %v369
    %581 = vmatprep.subr.mxu0 %v366
    %582 = vmatpush1.msra.mxu0 %v365
    %583 = vmatprep.subr.mxu0 %v362
    %584 = vmatpush1.msra.mxu0 %v361
    %585 = vmatprep.subr.mxu0 %v358
    %586 = vmatpush1.msra.mxu0 %v357
    %587 = vmatprep.subr.mxu0 %v354
    %588 = vmatpush1.msra.mxu0 %v353
    %589 = vmatprep.subr.mxu0 %v350
    %590 = vmatpush1.msra.mxu0 %v349
    %591 = vmatprep.subr.mxu0 %v346
    %592 = vmatpush1.msra.mxu0 %v345
    %593 = vmatprep.subr.mxu0 %v342
    %594 = vmatpush1.msra.mxu0 %v341
    %595 = vmatprep.subr.mxu0 %v338
    %596 = vmatpush1.msra.mxu0 %v337
    %597 = vmatprep.subr.mxu0 %v334
    %598 = vmatpush1.msra.mxu0 %v333
    %599 = vmatprep.subr.mxu0 0.0
    %600 = vmatpush2.msra.mxu0 0.0
    %601 = vmatprep.subr.mxu0 0.0
    %602 = vmatpush2.msra.mxu0 0.0
    %603 = vmatprep.subr.mxu0 0.0
    %604 = vmatpush2.msra.mxu0 0.0
    %605 = vmatprep.subr.mxu0 0.0
    %606 = vmatpush2.msra.mxu0 0.0
    %607 = vmatprep.subr.mxu0 0.0
    %608 = vmatpush2.msra.mxu0 0.0
    %609 = vmatprep.subr.mxu0 0.0
    %610 = vmatpush2.msra.mxu0 0.0
    %611 = vmatprep.subr.mxu0 0.0
    %612 = vmatpush2.msra.mxu0 0.0
    %613 = vmatprep.subr.mxu0 0.0
    %614 = vmatpush2.msra.mxu0 0.0
    %615 = vmatprep.subr.mxu0 0.0
    %616 = vmatpush2.msra.mxu0 0.0
    %617 = vmatprep.subr.mxu0 0.0
    %618 = vmatpush2.msra.mxu0 0.0
    %619 = vmatprep.subr.mxu0 0.0
    %620 = vmatpush2.msra.mxu0 0.0
    %621 = vmatprep.subr.mxu0 0.0
    %622 = vmatpush2.msra.mxu0 0.0
    %623 = vmatprep.subr.mxu0 0.0
    %624 = vmatpush2.msra.mxu0 0.0
    %625 = vmatprep.subr.mxu0 0.0
    %626 = vmatpush2.msra.mxu0 0.0
    %627 = vmatprep.subr.mxu0 0.0
    %628 = vmatpush2.msra.mxu0 0.0
    %629 = vmatprep.subr.mxu0 0.0
    %630 = vmatpush2.msra.mxu0 0.0
    %631 = vmatprep.mubr.f32.mxu0 0.0
    %632 = vmatmul.mubr.f32.gmra.mxu0 %v566
    %v633 = vpop.f32.mrf.mxu0
    %v634 = vadd.f32 0.0, %v633
    %v635 = vpop.f32.mrf.mxu0
    %v636 = vadd.f32 0.0, %v635
    %637 = vdwg.mxu0
    %638 = vmatprep.subr.mxu0 %v396
    %639 = vmatpush1.msra.mxu0 %v395
    %640 = vmatprep.subr.mxu0 %v392
    %641 = vmatpush1.msra.mxu0 %v391
    %642 = vmatprep.subr.mxu0 %v388
    %643 = vmatpush1.msra.mxu0 %v387
    %644 = vmatprep.subr.mxu0 %v384
    %645 = vmatpush1.msra.mxu0 %v383
    %646 = vmatprep.subr.mxu0 %v380
    %647 = vmatpush1.msra.mxu0 %v379
    %648 = vmatprep.subr.mxu0 %v376
    %649 = vmatpush1.msra.mxu0 %v375
    %650 = vmatprep.subr.mxu0 %v372
    %651 = vmatpush1.msra.mxu0 %v371
    %652 = vmatprep.subr.mxu0 %v368
    %653 = vmatpush1.msra.mxu0 %v367
    %654 = vmatprep.subr.mxu0 %v364
    %655 = vmatpush1.msra.mxu0 %v363
    %656 = vmatprep.subr.mxu0 %v360
    %657 = vmatpush1.msra.mxu0 %v359
    %658 = vmatprep.subr.mxu0 %v356
    %659 = vmatpush1.msra.mxu0 %v355
    %660 = vmatprep.subr.mxu0 %v352
    %661 = vmatpush1.msra.mxu0 %v351
    %662 = vmatprep.subr.mxu0 %v348
    %663 = vmatpush1.msra.mxu0 %v347
    %664 = vmatprep.subr.mxu0 %v344
    %665 = vmatpush1.msra.mxu0 %v343
    %666 = vmatprep.subr.mxu0 %v340
    %667 = vmatpush1.msra.mxu0 %v339
    %668 = vmatprep.subr.mxu0 %v336
    %669 = vmatpush1.msra.mxu0 %v335
    %670 = vmatprep.subr.mxu0 0.0
    %671 = vmatpush2.msra.mxu0 0.0
    %672 = vmatprep.subr.mxu0 0.0
    %673 = vmatpush2.msra.mxu0 0.0
    %674 = vmatprep.subr.mxu0 0.0
    %675 = vmatpush2.msra.mxu0 0.0
    %676 = vmatprep.subr.mxu0 0.0
    %677 = vmatpush2.msra.mxu0 0.0
    %678 = vmatprep.subr.mxu0 0.0
    %679 = vmatpush2.msra.mxu0 0.0
    %680 = vmatprep.subr.mxu0 0.0
    %681 = vmatpush2.msra.mxu0 0.0
    %682 = vmatprep.subr.mxu0 0.0
    %683 = vmatpush2.msra.mxu0 0.0
    %684 = vmatprep.subr.mxu0 0.0
    %685 = vmatpush2.msra.mxu0 0.0
    %686 = vmatprep.subr.mxu0 0.0
    %687 = vmatpush2.msra.mxu0 0.0
    %688 = vmatprep.subr.mxu0 0.0
    %689 = vmatpush2.msra.mxu0 0.0
    %690 = vmatprep.subr.mxu0 0.0
    %691 = vmatpush2.msra.mxu0 0.0
    %692 = vmatprep.subr.mxu0 0.0
    %693 = vmatpush2.msra.mxu0 0.0
    %694 = vmatprep.subr.mxu0 0.0
    %695 = vmatpush2.msra.mxu0 0.0
    %696 = vmatprep.subr.mxu0 0.0
    %697 = vmatpush2.msra.mxu0 0.0
    %698 = vmatprep.subr.mxu0 0.0
    %699 = vmatpush2.msra.mxu0 0.0
    %700 = vmatprep.subr.mxu0 0.0
    %701 = vmatpush2.msra.mxu0 0.0
    %702 = vmatprep.mubr.f32.mxu0 0.0
    %703 = vmatmul.mubr.f32.gmra.mxu0 %v566
    %v704 = vpop.f32.mrf.mxu0
    %v705 = vadd.f32 0.0, %v704
    %v706 = vpop.f32.mrf.mxu0
    %v707 = vadd.f32 0.0, %v706
    %708 = vdwg.mxu0
    %v709 = vadd.f32 %v180, %v634
    %v710 = vadd.f32 %v182, %v636
    %v711 = vadd.f32 %v293, %v705
    %v712 = vadd.f32 %v295, %v707
    %v713 = vxor.u32 %v709, 2147483648
    %v714 = vxor.u32 %v710, 2147483648
    %v715 = vxor.u32 %v711, 2147483648
    %v716 = vmul.f32 %v713, 1.442695
    %v717 = vpow.pop %v716
    %v718 = vmul.f32 %v714, 1.442695
    %v719 = vpow.pop %v718
    %v720 = vmul.f32 %v715, 1.442695
    %v721 = vpow.pop %v720
    %v722 = vadd.f32 %v717, 1.0
    %v723 = vadd.f32 %v719, 1.0
    %v724 = vadd.f32 %v721, 1.0
    %v725 = vrcp.pop %v722
    %v726 = vmul.f32 1.0, %v725
    %v727 = vrcp.pop %v723
    %v728 = vmul.f32 1.0, %v727
    %v729 = vrcp.pop %v724
    %v730 = vmul.f32 1.0, %v729
    %v731 = vtanh.pop %v712
    %v732 = vmul.f32 %v728, %v564
    %v733 = vmul.f32 %v726, %v731
    %v734 = vadd.f32 %v732, %v733
    %v735 = vtanh.pop %v734
    %v736 = vmul.f32 %v730, %v735
    %737 = vmatprep.subr.mxu0 %v394
    %738 = vmatpush1.msra.mxu0 %v393
    %739 = vmatprep.subr.mxu0 %v390
    %740 = vmatpush1.msra.mxu0 %v389
    %741 = vmatprep.subr.mxu0 %v386
    %742 = vmatpush1.msra.mxu0 %v385
    %743 = vmatprep.subr.mxu0 %v382
    %744 = vmatpush1.msra.mxu0 %v381
    %745 = vmatprep.subr.mxu0 %v378
    %746 = vmatpush1.msra.mxu0 %v377
    %747 = vmatprep.subr.mxu0 %v374
    %748 = vmatpush1.msra.mxu0 %v373
    %749 = vmatprep.subr.mxu0 %v370
    %750 = vmatpush1.msra.mxu0 %v369
    %751 = vmatprep.subr.mxu0 %v366
    %752 = vmatpush1.msra.mxu0 %v365
    %753 = vmatprep.subr.mxu0 %v362
    %754 = vmatpush1.msra.mxu0 %v361
    %755 = vmatprep.subr.mxu0 %v358
    %756 = vmatpush1.msra.mxu0 %v357
    %757 = vmatprep.subr.mxu0 %v354
    %758 = vmatpush1.msra.mxu0 %v353
    %759 = vmatprep.subr.mxu0 %v350
    %760 = vmatpush1.msra.mxu0 %v349
    %761 = vmatprep.subr.mxu0 %v346
    %762 = vmatpush1.msra.mxu0 %v345
    %763 = vmatprep.subr.mxu0 %v342
    %764 = vmatpush1.msra.mxu0 %v341
    %765 = vmatprep.subr.mxu0 %v338
    %766 = vmatpush1.msra.mxu0 %v337
    %767 = vmatprep.subr.mxu0 %v334
    %768 = vmatpush1.msra.mxu0 %v333
    %769 = vmatprep.subr.mxu0 0.0
    %770 = vmatpush2.msra.mxu0 0.0
    %771 = vmatprep.subr.mxu0 0.0
    %772 = vmatpush2.msra.mxu0 0.0
    %773 = vmatprep.subr.mxu0 0.0
    %774 = vmatpush2.msra.mxu0 0.0
    %775 = vmatprep.subr.mxu0 0.0
    %776 = vmatpush2.msra.mxu0 0.0
    %777 = vmatprep.subr.mxu0 0.0
    %778 = vmatpush2.msra.mxu0 0.0
    %779 = vmatprep.subr.mxu0 0.0
    %780 = vmatpush2.msra.mxu0 0.0
    %781 = vmatprep.subr.mxu0 0.0
    %782 = vmatpush2.msra.mxu0 0.0
    %783 = vmatprep.subr.mxu0 0.0
    %784 = vmatpush2.msra.mxu0 0.0
    %785 = vmatprep.subr.mxu0 0.0
    %786 = vmatpush2.msra.mxu0 0.0
    %787 = vmatprep.subr.mxu0 0.0
    %788 = vmatpush2.msra.mxu0 0.0
    %789 = vmatprep.subr.mxu0 0.0
    %790 = vmatpush2.msra.mxu0 0.0
    %791 = vmatprep.subr.mxu0 0.0
    %792 = vmatpush2.msra.mxu0 0.0
    %793 = vmatprep.subr.mxu0 0.0
    %794 = vmatpush2.msra.mxu0 0.0
    %795 = vmatprep.subr.mxu0 0.0
    %796 = vmatpush2.msra.mxu0 0.0
    %797 = vmatprep.subr.mxu0 0.0
    %798 = vmatpush2.msra.mxu0 0.0
    %799 = vmatprep.subr.mxu0 0.0
    %800 = vmatpush2.msra.mxu0 0.0
    %801 = vmatprep.mubr.f32.mxu0 0.0
    %802 = vmatmul.mubr.f32.gmra.mxu0 %v736
    %v803 = vpop.f32.mrf.mxu0
    %v804 = vadd.f32 0.0, %v803
    %v805 = vpop.f32.mrf.mxu0
    %v806 = vadd.f32 0.0, %v805
    %807 = vdwg.mxu0
    %808 = vmatprep.subr.mxu0 %v396
    %809 = vmatpush1.msra.mxu0 %v395
    %810 = vmatprep.subr.mxu0 %v392
    %811 = vmatpush1.msra.mxu0 %v391
    %812 = vmatprep.subr.mxu0 %v388
    %813 = vmatpush1.msra.mxu0 %v387
    %814 = vmatprep.subr.mxu0 %v384
    %815 = vmatpush1.msra.mxu0 %v383
    %816 = vmatprep.subr.mxu0 %v380
    %817 = vmatpush1.msra.mxu0 %v379
    %818 = vmatprep.subr.mxu0 %v376
    %819 = vmatpush1.msra.mxu0 %v375
    %820 = vmatprep.subr.mxu0 %v372
    %821 = vmatpush1.msra.mxu0 %v371
    %822 = vmatprep.subr.mxu0 %v368
    %823 = vmatpush1.msra.mxu0 %v367
    %824 = vmatprep.subr.mxu0 %v364
    %825 = vmatpush1.msra.mxu0 %v363
    %826 = vmatprep.subr.mxu0 %v360
    %827 = vmatpush1.msra.mxu0 %v359
    %828 = vmatprep.subr.mxu0 %v356
    %829 = vmatpush1.msra.mxu0 %v355
    %830 = vmatprep.subr.mxu0 %v352
    %831 = vmatpush1.msra.mxu0 %v351
    %832 = vmatprep.subr.mxu0 %v348
    %833 = vmatpush1.msra.mxu0 %v347
    %834 = vmatprep.subr.mxu0 %v344
    %835 = vmatpush1.msra.mxu0 %v343
    %836 = vmatprep.subr.mxu0 %v340
    %837 = vmatpush1.msra.mxu0 %v339
    %838 = vmatprep.subr.mxu0 %v336
    %839 = vmatpush1.msra.mxu0 %v335
    %840 = vmatprep.subr.mxu0 0.0
    %841 = vmatpush2.msra.mxu0 0.0
    %842 = vmatprep.subr.mxu0 0.0
    %843 = vmatpush2.msra.mxu0 0.0
    %844 = vmatprep.subr.mxu0 0.0
    %845 = vmatpush2.msra.mxu0 0.0
    %846 = vmatprep.subr.mxu0 0.0
    %847 = vmatpush2.msra.mxu0 0.0
    %848 = vmatprep.subr.mxu0 0.0
    %849 = vmatpush2.msra.mxu0 0.0
    %850 = vmatprep.subr.mxu0 0.0
    %851 = vmatpush2.msra.mxu0 0.0
    %852 = vmatprep.subr.mxu0 0.0
    %853 = vmatpush2.msra.mxu0 0.0
    %854 = vmatprep.subr.mxu0 0.0
    %855 = vmatpush2.msra.mxu0 0.0
    %856 = vmatprep.subr.mxu0 0.0
    %857 = vmatpush2.msra.mxu0 0.0
    %858 = vmatprep.subr.mxu0 0.0
    %859 = vmatpush2.msra.mxu0 0.0
    %860 = vmatprep.subr.mxu0 0.0
    %861 = vmatpush2.msra.mxu0 0.0
    %862 = vmatprep.subr.mxu0 0.0
    %863 = vmatpush2.msra.mxu0 0.0
    %864 = vmatprep.subr.mxu0 0.0
    %865 = vmatpush2.msra.mxu0 0.0
    %866 = vmatprep.subr.mxu0 0.0
    %867 = vmatpush2.msra.mxu0 0.0
    %868 = vmatprep.subr.mxu0 0.0
    %869 = vmatpush2.msra.mxu0 0.0
    %870 = vmatprep.subr.mxu0 0.0
    %871 = vmatpush2.msra.mxu0 0.0
    %872 = vmatprep.mubr.f32.mxu0 0.0
    %873 = vmatmul.mubr.f32.gmra.mxu0 %v736
    %v874 = vpop.f32.mrf.mxu0
    %v875 = vadd.f32 0.0, %v874
    %v876 = vpop.f32.mrf.mxu0
    %v877 = vadd.f32 0.0, %v876
    %878 = vdwg.mxu0
    %v879 = vadd.f32 %v186, %v804
    %v880 = vadd.f32 %v188, %v806
    %v881 = vadd.f32 %v299, %v875
    %v882 = vadd.f32 %v301, %v877
    %v883 = vxor.u32 %v879, 2147483648
    %v884 = vxor.u32 %v880, 2147483648
    %v885 = vxor.u32 %v881, 2147483648
    %v886 = vmul.f32 %v883, 1.442695
    %v887 = vpow.pop %v886
    %v888 = vmul.f32 %v884, 1.442695
    %v889 = vpow.pop %v888
    %v890 = vmul.f32 %v885, 1.442695
    %v891 = vpow.pop %v890
    %v892 = vadd.f32 %v887, 1.0
    %v893 = vadd.f32 %v889, 1.0
    %v894 = vadd.f32 %v891, 1.0
    %v895 = vrcp.pop %v892
    %v896 = vmul.f32 1.0, %v895
    %v897 = vrcp.pop %v893
    %v898 = vmul.f32 1.0, %v897
    %v899 = vrcp.pop %v894
    %v900 = vmul.f32 1.0, %v899
    %v901 = vtanh.pop %v882
    %v902 = vmul.f32 %v898, %v734
    %v903 = vmul.f32 %v896, %v901
    %v904 = vadd.f32 %v902, %v903
    %v905 = vtanh.pop %v904
    %v906 = vmul.f32 %v900, %v905
    %907 = vmatprep.subr.mxu0 %v394
    %908 = vmatpush1.msra.mxu0 %v393
    %909 = vmatprep.subr.mxu0 %v390
    %910 = vmatpush1.msra.mxu0 %v389
    %911 = vmatprep.subr.mxu0 %v386
    %912 = vmatpush1.msra.mxu0 %v385
    %913 = vmatprep.subr.mxu0 %v382
    %914 = vmatpush1.msra.mxu0 %v381
    %915 = vmatprep.subr.mxu0 %v378
    %916 = vmatpush1.msra.mxu0 %v377
    %917 = vmatprep.subr.mxu0 %v374
    %918 = vmatpush1.msra.mxu0 %v373
    %919 = vmatprep.subr.mxu0 %v370
    %920 = vmatpush1.msra.mxu0 %v369
    %921 = vmatprep.subr.mxu0 %v366
    %922 = vmatpush1.msra.mxu0 %v365
    %923 = vmatprep.subr.mxu0 %v362
    %924 = vmatpush1.msra.mxu0 %v361
    %925 = vmatprep.subr.mxu0 %v358
    %926 = vmatpush1.msra.mxu0 %v357
    %927 = vmatprep.subr.mxu0 %v354
    %928 = vmatpush1.msra.mxu0 %v353
    %929 = vmatprep.subr.mxu0 %v350
    %930 = vmatpush1.msra.mxu0 %v349
    %931 = vmatprep.subr.mxu0 %v346
    %932 = vmatpush1.msra.mxu0 %v345
    %933 = vmatprep.subr.mxu0 %v342
    %934 = vmatpush1.msra.mxu0 %v341
    %935 = vmatprep.subr.mxu0 %v338
    %936 = vmatpush1.msra.mxu0 %v337
    %937 = vmatprep.subr.mxu0 %v334
    %938 = vmatpush1.msra.mxu0 %v333
    %939 = vmatprep.subr.mxu0 0.0
    %940 = vmatpush2.msra.mxu0 0.0
    %941 = vmatprep.subr.mxu0 0.0
    %942 = vmatpush2.msra.mxu0 0.0
    %943 = vmatprep.subr.mxu0 0.0
    %944 = vmatpush2.msra.mxu0 0.0
    %945 = vmatprep.subr.mxu0 0.0
    %946 = vmatpush2.msra.mxu0 0.0
    %947 = vmatprep.subr.mxu0 0.0
    %948 = vmatpush2.msra.mxu0 0.0
    %949 = vmatprep.subr.mxu0 0.0
    %950 = vmatpush2.msra.mxu0 0.0
    %951 = vmatprep.subr.mxu0 0.0
    %952 = vmatpush2.msra.mxu0 0.0
    %953 = vmatprep.subr.mxu0 0.0
    %954 = vmatpush2.msra.mxu0 0.0
    %955 = vmatprep.subr.mxu0 0.0
    %956 = vmatpush2.msra.mxu0 0.0
    %957 = vmatprep.subr.mxu0 0.0
    %958 = vmatpush2.msra.mxu0 0.0
    %959 = vmatprep.subr.mxu0 0.0
    %960 = vmatpush2.msra.mxu0 0.0
    %961 = vmatprep.subr.mxu0 0.0
    %962 = vmatpush2.msra.mxu0 0.0
    %963 = vmatprep.subr.mxu0 0.0
    %964 = vmatpush2.msra.mxu0 0.0
    %965 = vmatprep.subr.mxu0 0.0
    %966 = vmatpush2.msra.mxu0 0.0
    %967 = vmatprep.subr.mxu0 0.0
    %968 = vmatpush2.msra.mxu0 0.0
    %969 = vmatprep.subr.mxu0 0.0
    %970 = vmatpush2.msra.mxu0 0.0
    %971 = vmatprep.mubr.f32.mxu0 0.0
    %972 = vmatmul.mubr.f32.gmra.mxu0 %v906
    %v973 = vpop.f32.mrf.mxu0
    %v974 = vadd.f32 0.0, %v973
    %v975 = vpop.f32.mrf.mxu0
    %v976 = vadd.f32 0.0, %v975
    %977 = vdwg.mxu0
    %978 = vmatprep.subr.mxu0 %v396
    %979 = vmatpush1.msra.mxu0 %v395
    %980 = vmatprep.subr.mxu0 %v392
    %981 = vmatpush1.msra.mxu0 %v391
    %982 = vmatprep.subr.mxu0 %v388
    %983 = vmatpush1.msra.mxu0 %v387
    %984 = vmatprep.subr.mxu0 %v384
    %985 = vmatpush1.msra.mxu0 %v383
    %986 = vmatprep.subr.mxu0 %v380
    %987 = vmatpush1.msra.mxu0 %v379
    %988 = vmatprep.subr.mxu0 %v376
    %989 = vmatpush1.msra.mxu0 %v375
    %990 = vmatprep.subr.mxu0 %v372
    %991 = vmatpush1.msra.mxu0 %v371
    %992 = vmatprep.subr.mxu0 %v368
    %993 = vmatpush1.msra.mxu0 %v367
    %994 = vmatprep.subr.mxu0 %v364
    %995 = vmatpush1.msra.mxu0 %v363
    %996 = vmatprep.subr.mxu0 %v360
    %997 = vmatpush1.msra.mxu0 %v359
    %998 = vmatprep.subr.mxu0 %v356
    %999 = vmatpush1.msra.mxu0 %v355
    %1000 = vmatprep.subr.mxu0 %v352
    %1001 = vmatpush1.msra.mxu0 %v351
    %1002 = vmatprep.subr.mxu0 %v348
    %1003 = vmatpush1.msra.mxu0 %v347
    %1004 = vmatprep.subr.mxu0 %v344
    %1005 = vmatpush1.msra.mxu0 %v343
    %1006 = vmatprep.subr.mxu0 %v340
    %1007 = vmatpush1.msra.mxu0 %v339
    %1008 = vmatprep.subr.mxu0 %v336
    %1009 = vmatpush1.msra.mxu0 %v335
    %1010 = vmatprep.subr.mxu0 0.0
    %1011 = vmatpush2.msra.mxu0 0.0
    %1012 = vmatprep.subr.mxu0 0.0
    %1013 = vmatpush2.msra.mxu0 0.0
    %1014 = vmatprep.subr.mxu0 0.0
    %1015 = vmatpush2.msra.mxu0 0.0
    %1016 = vmatprep.subr.mxu0 0.0
    %1017 = vmatpush2.msra.mxu0 0.0
    %1018 = vmatprep.subr.mxu0 0.0
    %1019 = vmatpush2.msra.mxu0 0.0
    %1020 = vmatprep.subr.mxu0 0.0
    %1021 = vmatpush2.msra.mxu0 0.0
    %1022 = vmatprep.subr.mxu0 0.0
    %1023 = vmatpush2.msra.mxu0 0.0
    %1024 = vmatprep.subr.mxu0 0.0
    %1025 = vmatpush2.msra.mxu0 0.0
    %1026 = vmatprep.subr.mxu0 0.0
    %1027 = vmatpush2.msra.mxu0 0.0
    %1028 = vmatprep.subr.mxu0 0.0
    %1029 = vmatpush2.msra.mxu0 0.0
    %1030 = vmatprep.subr.mxu0 0.0
    %1031 = vmatpush2.msra.mxu0 0.0
    %1032 = vmatprep.subr.mxu0 0.0
    %1033 = vmatpush2.msra.mxu0 0.0
    %1034 = vmatprep.subr.mxu0 0.0
    %1035 = vmatpush2.msra.mxu0 0.0
    %1036 = vmatprep.subr.mxu0 0.0
    %1037 = vmatpush2.msra.mxu0 0.0
    %1038 = vmatprep.subr.mxu0 0.0
    %1039 = vmatpush2.msra.mxu0 0.0
    %1040 = vmatprep.subr.mxu0 0.0
    %1041 = vmatpush2.msra.mxu0 0.0
    %1042 = vmatprep.mubr.f32.mxu0 0.0
    %1043 = vmatmul.mubr.f32.gmra.mxu0 %v906
    %v1044 = vpop.f32.mrf.mxu0
    %v1045 = vadd.f32 0.0, %v1044
    %v1046 = vpop.f32.mrf.mxu0
    %v1047 = vadd.f32 0.0, %v1046
    %1048 = vdwg.mxu0
    %v1049 = vadd.f32 %v192, %v974
    %v1050 = vadd.f32 %v194, %v976
    %v1051 = vadd.f32 %v305, %v1045
    %v1052 = vadd.f32 %v307, %v1047
    %v1053 = vxor.u32 %v1049, 2147483648
    %v1054 = vxor.u32 %v1050, 2147483648
    %v1055 = vxor.u32 %v1051, 2147483648
    %v1056 = vmul.f32 %v1053, 1.442695
    %v1057 = vpow.pop %v1056
    %v1058 = vmul.f32 %v1054, 1.442695
    %v1059 = vpow.pop %v1058
    %v1060 = vmul.f32 %v1055, 1.442695
    %v1061 = vpow.pop %v1060
    %v1062 = vadd.f32 %v1057, 1.0
    %v1063 = vadd.f32 %v1059, 1.0
    %v1064 = vadd.f32 %v1061, 1.0
    %v1065 = vrcp.pop %v1062
    %v1066 = vmul.f32 1.0, %v1065
    %v1067 = vrcp.pop %v1063
    %v1068 = vmul.f32 1.0, %v1067
    %v1069 = vrcp.pop %v1064
    %v1070 = vmul.f32 1.0, %v1069
    %v1071 = vtanh.pop %v1052
    %v1072 = vmul.f32 %v1068, %v904
    %v1073 = vmul.f32 %v1066, %v1071
    %v1074 = vadd.f32 %v1072, %v1073
    %v1075 = vtanh.pop %v1074
    %v1076 = vmul.f32 %v1070, %v1075
    %1077 = vmatprep.subr.mxu0 %v394
    %1078 = vmatpush1.msra.mxu0 %v393
    %1079 = vmatprep.subr.mxu0 %v390
    %1080 = vmatpush1.msra.mxu0 %v389
    %1081 = vmatprep.subr.mxu0 %v386
    %1082 = vmatpush1.msra.mxu0 %v385
    %1083 = vmatprep.subr.mxu0 %v382
    %1084 = vmatpush1.msra.mxu0 %v381
    %1085 = vmatprep.subr.mxu0 %v378
    %1086 = vmatpush1.msra.mxu0 %v377
    %1087 = vmatprep.subr.mxu0 %v374
    %1088 = vmatpush1.msra.mxu0 %v373
    %1089 = vmatprep.subr.mxu0 %v370
    %1090 = vmatpush1.msra.mxu0 %v369
    %1091 = vmatprep.subr.mxu0 %v366
    %1092 = vmatpush1.msra.mxu0 %v365
    %1093 = vmatprep.subr.mxu0 %v362
    %1094 = vmatpush1.msra.mxu0 %v361
    %1095 = vmatprep.subr.mxu0 %v358
    %1096 = vmatpush1.msra.mxu0 %v357
    %1097 = vmatprep.subr.mxu0 %v354
    %1098 = vmatpush1.msra.mxu0 %v353
    %1099 = vmatprep.subr.mxu0 %v350
    %1100 = vmatpush1.msra.mxu0 %v349
    %1101 = vmatprep.subr.mxu0 %v346
    %1102 = vmatpush1.msra.mxu0 %v345
    %1103 = vmatprep.subr.mxu0 %v342
    %1104 = vmatpush1.msra.mxu0 %v341
    %1105 = vmatprep.subr.mxu0 %v338
    %1106 = vmatpush1.msra.mxu0 %v337
    %1107 = vmatprep.subr.mxu0 %v334
    %1108 = vmatpush1.msra.mxu0 %v333
    %1109 = vmatprep.subr.mxu0 0.0
    %1110 = vmatpush2.msra.mxu0 0.0
    %1111 = vmatprep.subr.mxu0 0.0
    %1112 = vmatpush2.msra.mxu0 0.0
    %1113 = vmatprep.subr.mxu0 0.0
    %1114 = vmatpush2.msra.mxu0 0.0
    %1115 = vmatprep.subr.mxu0 0.0
    %1116 = vmatpush2.msra.mxu0 0.0
    %1117 = vmatprep.subr.mxu0 0.0
    %1118 = vmatpush2.msra.mxu0 0.0
    %1119 = vmatprep.subr.mxu0 0.0
    %1120 = vmatpush2.msra.mxu0 0.0
    %1121 = vmatprep.subr.mxu0 0.0
    %1122 = vmatpush2.msra.mxu0 0.0
    %1123 = vmatprep.subr.mxu0 0.0
    %1124 = vmatpush2.msra.mxu0 0.0
    %1125 = vmatprep.subr.mxu0 0.0
    %1126 = vmatpush2.msra.mxu0 0.0
    %1127 = vmatprep.subr.mxu0 0.0
    %1128 = vmatpush2.msra.mxu0 0.0
    %1129 = vmatprep.subr.mxu0 0.0
    %1130 = vmatpush2.msra.mxu0 0.0
    %1131 = vmatprep.subr.mxu0 0.0
    %1132 = vmatpush2.msra.mxu0 0.0
    %1133 = vmatprep.subr.mxu0 0.0
    %1134 = vmatpush2.msra.mxu0 0.0
    %1135 = vmatprep.subr.mxu0 0.0
    %1136 = vmatpush2.msra.mxu0 0.0
    %1137 = vmatprep.subr.mxu0 0.0
    %1138 = vmatpush2.msra.mxu0 0.0
    %1139 = vmatprep.subr.mxu0 0.0
    %1140 = vmatpush2.msra.mxu0 0.0
    %1141 = vmatprep.mubr.f32.mxu0 0.0
    %1142 = vmatmul.mubr.f32.gmra.mxu0 %v1076
    %v1143 = vpop.f32.mrf.mxu0
    %v1144 = vadd.f32 0.0, %v1143
    %v1145 = vpop.f32.mrf.mxu0
    %v1146 = vadd.f32 0.0, %v1145
    %1147 = vdwg.mxu0
    %1148 = vmatprep.subr.mxu0 %v396
    %1149 = vmatpush1.msra.mxu0 %v395
    %1150 = vmatprep.subr.mxu0 %v392
    %1151 = vmatpush1.msra.mxu0 %v391
    %1152 = vmatprep.subr.mxu0 %v388
    %1153 = vmatpush1.msra.mxu0 %v387
    %1154 = vmatprep.subr.mxu0 %v384
    %1155 = vmatpush1.msra.mxu0 %v383
    %1156 = vmatprep.subr.mxu0 %v380
    %1157 = vmatpush1.msra.mxu0 %v379
    %1158 = vmatprep.subr.mxu0 %v376
    %1159 = vmatpush1.msra.mxu0 %v375
    %1160 = vmatprep.subr.mxu0 %v372
    %1161 = vmatpush1.msra.mxu0 %v371
    %1162 = vmatprep.subr.mxu0 %v368
    %1163 = vmatpush1.msra.mxu0 %v367
    %1164 = vmatprep.subr.mxu0 %v364
    %1165 = vmatpush1.msra.mxu0 %v363
    %1166 = vmatprep.subr.mxu0 %v360
    %1167 = vmatpush1.msra.mxu0 %v359
    %1168 = vmatprep.subr.mxu0 %v356
    %1169 = vmatpush1.msra.mxu0 %v355
    %1170 = vmatprep.subr.mxu0 %v352
    %1171 = vmatpush1.msra.mxu0 %v351
    %1172 = vmatprep.subr.mxu0 %v348
    %1173 = vmatpush1.msra.mxu0 %v347
    %1174 = vmatprep.subr.mxu0 %v344
    %1175 = vmatpush1.msra.mxu0 %v343
    %1176 = vmatprep.subr.mxu0 %v340
    %1177 = vmatpush1.msra.mxu0 %v339
    %1178 = vmatprep.subr.mxu0 %v336
    %1179 = vmatpush1.msra.mxu0 %v335
    %1180 = vmatprep.subr.mxu0 0.0
    %1181 = vmatpush2.msra.mxu0 0.0
    %1182 = vmatprep.subr.mxu0 0.0
    %1183 = vmatpush2.msra.mxu0 0.0
    %1184 = vmatprep.subr.mxu0 0.0
    %1185 = vmatpush2.msra.mxu0 0.0
    %1186 = vmatprep.subr.mxu0 0.0
    %1187 = vmatpush2.msra.mxu0 0.0
    %1188 = vmatprep.subr.mxu0 0.0
    %1189 = vmatpush2.msra.mxu0 0.0
    %1190 = vmatprep.subr.mxu0 0.0
    %1191 = vmatpush2.msra.mxu0 0.0
    %1192 = vmatprep.subr.mxu0 0.0
    %1193 = vmatpush2.msra.mxu0 0.0
    %1194 = vmatprep.subr.mxu0 0.0
    %1195 = vmatpush2.msra.mxu0 0.0
    %1196 = vmatprep.subr.mxu0 0.0
    %1197 = vmatpush2.msra.mxu0 0.0
    %1198 = vmatprep.subr.mxu0 0.0
    %1199 = vmatpush2.msra.mxu0 0.0
    %1200 = vmatprep.subr.mxu0 0.0
    %1201 = vmatpush2.msra.mxu0 0.0
    %1202 = vmatprep.subr.mxu0 0.0
    %1203 = vmatpush2.msra.mxu0 0.0
    %1204 = vmatprep.subr.mxu0 0.0
    %1205 = vmatpush2.msra.mxu0 0.0
    %1206 = vmatprep.subr.mxu0 0.0
    %1207 = vmatpush2.msra.mxu0 0.0
    %1208 = vmatprep.subr.mxu0 0.0
    %1209 = vmatpush2.msra.mxu0 0.0
    %1210 = vmatprep.subr.mxu0 0.0
    %1211 = vmatpush2.msra.mxu0 0.0
    %1212 = vmatprep.mubr.f32.mxu0 0.0
    %1213 = vmatmul.mubr.f32.gmra.mxu0 %v1076
    %v1214 = vpop.f32.mrf.mxu0
    %v1215 = vadd.f32 0.0, %v1214
    %v1216 = vpop.f32.mrf.mxu0
    %v1217 = vadd.f32 0.0, %v1216
    %1218 = vdwg.mxu0
    %v1219 = vadd.f32 %v198, %v1144
    %v1220 = vadd.f32 %v200, %v1146
    %v1221 = vadd.f32 %v311, %v1215
    %v1222 = vadd.f32 %v313, %v1217
    %v1223 = vxor.u32 %v1219, 2147483648
    %v1224 = vxor.u32 %v1220, 2147483648
    %v1225 = vxor.u32 %v1221, 2147483648
    %v1226 = vmul.f32 %v1223, 1.442695
    %v1227 = vpow.pop %v1226
    %v1228 = vmul.f32 %v1224, 1.442695
    %v1229 = vpow.pop %v1228
    %v1230 = vmul.f32 %v1225, 1.442695
    %v1231 = vpow.pop %v1230
    %v1232 = vadd.f32 %v1227, 1.0
    %v1233 = vadd.f32 %v1229, 1.0
    %v1234 = vadd.f32 %v1231, 1.0
    %v1235 = vrcp.pop %v1232
    %v1236 = vmul.f32 1.0, %v1235
    %v1237 = vrcp.pop %v1233
    %v1238 = vmul.f32 1.0, %v1237
    %v1239 = vrcp.pop %v1234
    %v1240 = vmul.f32 1.0, %v1239
    %v1241 = vtanh.pop %v1222
    %v1242 = vmul.f32 %v1238, %v1074
    %v1243 = vmul.f32 %v1236, %v1241
    %v1244 = vadd.f32 %v1242, %v1243
    %v1245 = vtanh.pop %v1244
    %v1246 = vmul.f32 %v1240, %v1245
    %1247 = vmatprep.subr.mxu0 %v394
    %1248 = vmatpush1.msra.mxu0 %v393
    %1249 = vmatprep.subr.mxu0 %v390
    %1250 = vmatpush1.msra.mxu0 %v389
    %1251 = vmatprep.subr.mxu0 %v386
    %1252 = vmatpush1.msra.mxu0 %v385
    %1253 = vmatprep.subr.mxu0 %v382
    %1254 = vmatpush1.msra.mxu0 %v381
    %1255 = vmatprep.subr.mxu0 %v378
    %1256 = vmatpush1.msra.mxu0 %v377
    %1257 = vmatprep.subr.mxu0 %v374
    %1258 = vmatpush1.msra.mxu0 %v373
    %1259 = vmatprep.subr.mxu0 %v370
    %1260 = vmatpush1.msra.mxu0 %v369
    %1261 = vmatprep.subr.mxu0 %v366
    %1262 = vmatpush1.msra.mxu0 %v365
    %1263 = vmatprep.subr.mxu0 %v362
    %1264 = vmatpush1.msra.mxu0 %v361
    %1265 = vmatprep.subr.mxu0 %v358
    %1266 = vmatpush1.msra.mxu0 %v357
    %1267 = vmatprep.subr.mxu0 %v354
    %1268 = vmatpush1.msra.mxu0 %v353
    %1269 = vmatprep.subr.mxu0 %v350
    %1270 = vmatpush1.msra.mxu0 %v349
    %1271 = vmatprep.subr.mxu0 %v346
    %1272 = vmatpush1.msra.mxu0 %v345
    %1273 = vmatprep.subr.mxu0 %v342
    %1274 = vmatpush1.msra.mxu0 %v341
    %1275 = vmatprep.subr.mxu0 %v338
    %1276 = vmatpush1.msra.mxu0 %v337
    %1277 = vmatprep.subr.mxu0 %v334
    %1278 = vmatpush1.msra.mxu0 %v333
    %1279 = vmatprep.subr.mxu0 0.0
    %1280 = vmatpush2.msra.mxu0 0.0
    %1281 = vmatprep.subr.mxu0 0.0
    %1282 = vmatpush2.msra.mxu0 0.0
    %1283 = vmatprep.subr.mxu0 0.0
    %1284 = vmatpush2.msra.mxu0 0.0
    %1285 = vmatprep.subr.mxu0 0.0
    %1286 = vmatpush2.msra.mxu0 0.0
    %1287 = vmatprep.subr.mxu0 0.0
    %1288 = vmatpush2.msra.mxu0 0.0
    %1289 = vmatprep.subr.mxu0 0.0
    %1290 = vmatpush2.msra.mxu0 0.0
    %1291 = vmatprep.subr.mxu0 0.0
    %1292 = vmatpush2.msra.mxu0 0.0
    %1293 = vmatprep.subr.mxu0 0.0
    %1294 = vmatpush2.msra.mxu0 0.0
    %1295 = vmatprep.subr.mxu0 0.0
    %1296 = vmatpush2.msra.mxu0 0.0
    %1297 = vmatprep.subr.mxu0 0.0
    %1298 = vmatpush2.msra.mxu0 0.0
    %1299 = vmatprep.subr.mxu0 0.0
    %1300 = vmatpush2.msra.mxu0 0.0
    %1301 = vmatprep.subr.mxu0 0.0
    %1302 = vmatpush2.msra.mxu0 0.0
    %1303 = vmatprep.subr.mxu0 0.0
    %1304 = vmatpush2.msra.mxu0 0.0
    %1305 = vmatprep.subr.mxu0 0.0
    %1306 = vmatpush2.msra.mxu0 0.0
    %1307 = vmatprep.subr.mxu0 0.0
    %1308 = vmatpush2.msra.mxu0 0.0
    %1309 = vmatprep.subr.mxu0 0.0
    %1310 = vmatpush2.msra.mxu0 0.0
    %1311 = vmatprep.mubr.f32.mxu0 0.0
    %1312 = vmatmul.mubr.f32.gmra.mxu0 %v1246
    %v1313 = vpop.f32.mrf.mxu0
    %v1314 = vadd.f32 0.0, %v1313
    %v1315 = vpop.f32.mrf.mxu0
    %v1316 = vadd.f32 0.0, %v1315
    %1317 = vdwg.mxu0
    %1318 = vmatprep.subr.mxu0 %v396
    %1319 = vmatpush1.msra.mxu0 %v395
    %1320 = vmatprep.subr.mxu0 %v392
    %1321 = vmatpush1.msra.mxu0 %v391
    %1322 = vmatprep.subr.mxu0 %v388
    %1323 = vmatpush1.msra.mxu0 %v387
    %1324 = vmatprep.subr.mxu0 %v384
    %1325 = vmatpush1.msra.mxu0 %v383
    %1326 = vmatprep.subr.mxu0 %v380
    %1327 = vmatpush1.msra.mxu0 %v379
    %1328 = vmatprep.subr.mxu0 %v376
    %1329 = vmatpush1.msra.mxu0 %v375
    %1330 = vmatprep.subr.mxu0 %v372
    %1331 = vmatpush1.msra.mxu0 %v371
    %1332 = vmatprep.subr.mxu0 %v368
    %1333 = vmatpush1.msra.mxu0 %v367
    %1334 = vmatprep.subr.mxu0 %v364
    %1335 = vmatpush1.msra.mxu0 %v363
    %1336 = vmatprep.subr.mxu0 %v360
    %1337 = vmatpush1.msra.mxu0 %v359
    %1338 = vmatprep.subr.mxu0 %v356
    %1339 = vmatpush1.msra.mxu0 %v355
    %1340 = vmatprep.subr.mxu0 %v352
    %1341 = vmatpush1.msra.mxu0 %v351
    %1342 = vmatprep.subr.mxu0 %v348
    %1343 = vmatpush1.msra.mxu0 %v347
    %1344 = vmatprep.subr.mxu0 %v344
    %1345 = vmatpush1.msra.mxu0 %v343
    %1346 = vmatprep.subr.mxu0 %v340
    %1347 = vmatpush1.msra.mxu0 %v339
    %1348 = vmatprep.subr.mxu0 %v336
    %1349 = vmatpush1.msra.mxu0 %v335
    %1350 = vmatprep.subr.mxu0 0.0
    %1351 = vmatpush2.msra.mxu0 0.0
    %1352 = vmatprep.subr.mxu0 0.0
    %1353 = vmatpush2.msra.mxu0 0.0
    %1354 = vmatprep.subr.mxu0 0.0
    %1355 = vmatpush2.msra.mxu0 0.0
    %1356 = vmatprep.subr.mxu0 0.0
    %1357 = vmatpush2.msra.mxu0 0.0
    %1358 = vmatprep.subr.mxu0 0.0
    %1359 = vmatpush2.msra.mxu0 0.0
    %1360 = vmatprep.subr.mxu0 0.0
    %1361 = vmatpush2.msra.mxu0 0.0
    %1362 = vmatprep.subr.mxu0 0.0
    %1363 = vmatpush2.msra.mxu0 0.0
    %1364 = vmatprep.subr.mxu0 0.0
    %1365 = vmatpush2.msra.mxu0 0.0
    %1366 = vmatprep.subr.mxu0 0.0
    %1367 = vmatpush2.msra.mxu0 0.0
    %1368 = vmatprep.subr.mxu0 0.0
    %1369 = vmatpush2.msra.mxu0 0.0
    %1370 = vmatprep.subr.mxu0 0.0
    %1371 = vmatpush2.msra.mxu0 0.0
    %1372 = vmatprep.subr.mxu0 0.0
    %1373 = vmatpush2.msra.mxu0 0.0
    %1374 = vmatprep.subr.mxu0 0.0
    %1375 = vmatpush2.msra.mxu0 0.0
    %1376 = vmatprep.subr.mxu0 0.0
    %1377 = vmatpush2.msra.mxu0 0.0
    %1378 = vmatprep.subr.mxu0 0.0
    %1379 = vmatpush2.msra.mxu0 0.0
    %1380 = vmatprep.subr.mxu0 0.0
    %1381 = vmatpush2.msra.mxu0 0.0
    %1382 = vmatprep.mubr.f32.mxu0 0.0
    %1383 = vmatmul.mubr.f32.gmra.mxu0 %v1246
    %v1384 = vpop.f32.mrf.mxu0
    %v1385 = vadd.f32 0.0, %v1384
    %v1386 = vpop.f32.mrf.mxu0
    %v1387 = vadd.f32 0.0, %v1386
    %1388 = vdwg.mxu0
    %v1389 = vadd.f32 %v204, %v1314
    %v1390 = vadd.f32 %v206, %v1316
    %v1391 = vadd.f32 %v317, %v1385
    %v1392 = vadd.f32 %v319, %v1387
    %v1393 = vxor.u32 %v1389, 2147483648
    %v1394 = vxor.u32 %v1390, 2147483648
    %v1395 = vxor.u32 %v1391, 2147483648
    %v1396 = vmul.f32 %v1393, 1.442695
    %v1397 = vpow.pop %v1396
    %v1398 = vmul.f32 %v1394, 1.442695
    %v1399 = vpow.pop %v1398
    %v1400 = vmul.f32 %v1395, 1.442695
    %v1401 = vpow.pop %v1400
    %v1402 = vadd.f32 %v1397, 1.0
    %v1403 = vadd.f32 %v1399, 1.0
    %v1404 = vadd.f32 %v1401, 1.0
    %v1405 = vrcp.pop %v1402
    %v1406 = vmul.f32 1.0, %v1405
    %v1407 = vrcp.pop %v1403
    %v1408 = vmul.f32 1.0, %v1407
    %v1409 = vrcp.pop %v1404
    %v1410 = vmul.f32 1.0, %v1409
    %v1411 = vtanh.pop %v1392
    %v1412 = vmul.f32 %v1408, %v1244
    %v1413 = vmul.f32 %v1406, %v1411
    %v1414 = vadd.f32 %v1412, %v1413
    %v1415 = vtanh.pop %v1414
    %v1416 = vmul.f32 %v1410, %v1415
    %1417 = vmatprep.subr.mxu0 %v394
    %1418 = vmatpush1.msra.mxu0 %v393
    %1419 = vmatprep.subr.mxu0 %v390
    %1420 = vmatpush1.msra.mxu0 %v389
    %1421 = vmatprep.subr.mxu0 %v386
    %1422 = vmatpush1.msra.mxu0 %v385
    %1423 = vmatprep.subr.mxu0 %v382
    %1424 = vmatpush1.msra.mxu0 %v381
    %1425 = vmatprep.subr.mxu0 %v378
    %1426 = vmatpush1.msra.mxu0 %v377
    %1427 = vmatprep.subr.mxu0 %v374
    %1428 = vmatpush1.msra.mxu0 %v373
    %1429 = vmatprep.subr.mxu0 %v370
    %1430 = vmatpush1.msra.mxu0 %v369
    %1431 = vmatprep.subr.mxu0 %v366
    %1432 = vmatpush1.msra.mxu0 %v365
    %1433 = vmatprep.subr.mxu0 %v362
    %1434 = vmatpush1.msra.mxu0 %v361
    %1435 = vmatprep.subr.mxu0 %v358
    %1436 = vmatpush1.msra.mxu0 %v357
    %1437 = vmatprep.subr.mxu0 %v354
    %1438 = vmatpush1.msra.mxu0 %v353
    %1439 = vmatprep.subr.mxu0 %v350
    %1440 = vmatpush1.msra.mxu0 %v349
    %1441 = vmatprep.subr.mxu0 %v346
    %1442 = vmatpush1.msra.mxu0 %v345
    %1443 = vmatprep.subr.mxu0 %v342
    %1444 = vmatpush1.msra.mxu0 %v341
    %1445 = vmatprep.subr.mxu0 %v338
    %1446 = vmatpush1.msra.mxu0 %v337
    %1447 = vmatprep.subr.mxu0 %v334
    %1448 = vmatpush1.msra.mxu0 %v333
    %1449 = vmatprep.subr.mxu0 0.0
    %1450 = vmatpush2.msra.mxu0 0.0
    %1451 = vmatprep.subr.mxu0 0.0
    %1452 = vmatpush2.msra.mxu0 0.0
    %1453 = vmatprep.subr.mxu0 0.0
    %1454 = vmatpush2.msra.mxu0 0.0
    %1455 = vmatprep.subr.mxu0 0.0
    %1456 = vmatpush2.msra.mxu0 0.0
    %1457 = vmatprep.subr.mxu0 0.0
    %1458 = vmatpush2.msra.mxu0 0.0
    %1459 = vmatprep.subr.mxu0 0.0
    %1460 = vmatpush2.msra.mxu0 0.0
    %1461 = vmatprep.subr.mxu0 0.0
    %1462 = vmatpush2.msra.mxu0 0.0
    %1463 = vmatprep.subr.mxu0 0.0
    %1464 = vmatpush2.msra.mxu0 0.0
    %1465 = vmatprep.subr.mxu0 0.0
    %1466 = vmatpush2.msra.mxu0 0.0
    %1467 = vmatprep.subr.mxu0 0.0
    %1468 = vmatpush2.msra.mxu0 0.0
    %1469 = vmatprep.subr.mxu0 0.0
    %1470 = vmatpush2.msra.mxu0 0.0
    %1471 = vmatprep.subr.mxu0 0.0
    %1472 = vmatpush2.msra.mxu0 0.0
    %1473 = vmatprep.subr.mxu0 0.0
    %1474 = vmatpush2.msra.mxu0 0.0
    %1475 = vmatprep.subr.mxu0 0.0
    %1476 = vmatpush2.msra.mxu0 0.0
    %1477 = vmatprep.subr.mxu0 0.0
    %1478 = vmatpush2.msra.mxu0 0.0
    %1479 = vmatprep.subr.mxu0 0.0
    %1480 = vmatpush2.msra.mxu0 0.0
    %1481 = vmatprep.mubr.f32.mxu0 0.0
    %1482 = vmatmul.mubr.f32.gmra.mxu0 %v1416
    %v1483 = vpop.f32.mrf.mxu0
    %v1484 = vadd.f32 0.0, %v1483
    %v1485 = vpop.f32.mrf.mxu0
    %v1486 = vadd.f32 0.0, %v1485
    %1487 = vdwg.mxu0
    %1488 = vmatprep.subr.mxu0 %v396
    %1489 = vmatpush1.msra.mxu0 %v395
    %1490 = vmatprep.subr.mxu0 %v392
    %1491 = vmatpush1.msra.mxu0 %v391
    %1492 = vmatprep.subr.mxu0 %v388
    %1493 = vmatpush1.msra.mxu0 %v387
    %1494 = vmatprep.subr.mxu0 %v384
    %1495 = vmatpush1.msra.mxu0 %v383
    %1496 = vmatprep.subr.mxu0 %v380
    %1497 = vmatpush1.msra.mxu0 %v379
    %1498 = vmatprep.subr.mxu0 %v376
    %1499 = vmatpush1.msra.mxu0 %v375
    %1500 = vmatprep.subr.mxu0 %v372
    %1501 = vmatpush1.msra.mxu0 %v371
    %1502 = vmatprep.subr.mxu0 %v368
    %1503 = vmatpush1.msra.mxu0 %v367
    %1504 = vmatprep.subr.mxu0 %v364
    %1505 = vmatpush1.msra.mxu0 %v363
    %1506 = vmatprep.subr.mxu0 %v360
    %1507 = vmatpush1.msra.mxu0 %v359
    %1508 = vmatprep.subr.mxu0 %v356
    %1509 = vmatpush1.msra.mxu0 %v355
    %1510 = vmatprep.subr.mxu0 %v352
    %1511 = vmatpush1.msra.mxu0 %v351
    %1512 = vmatprep.subr.mxu0 %v348
    %1513 = vmatpush1.msra.mxu0 %v347
    %1514 = vmatprep.subr.mxu0 %v344
    %1515 = vmatpush1.msra.mxu0 %v343
    %1516 = vmatprep.subr.mxu0 %v340
    %1517 = vmatpush1.msra.mxu0 %v339
    %1518 = vmatprep.subr.mxu0 %v336
    %1519 = vmatpush1.msra.mxu0 %v335
    %1520 = vmatprep.subr.mxu0 0.0
    %1521 = vmatpush2.msra.mxu0 0.0
    %1522 = vmatprep.subr.mxu0 0.0
    %1523 = vmatpush2.msra.mxu0 0.0
    %1524 = vmatprep.subr.mxu0 0.0
    %1525 = vmatpush2.msra.mxu0 0.0
    %1526 = vmatprep.subr.mxu0 0.0
    %1527 = vmatpush2.msra.mxu0 0.0
    %1528 = vmatprep.subr.mxu0 0.0
    %1529 = vmatpush2.msra.mxu0 0.0
    %1530 = vmatprep.subr.mxu0 0.0
    %1531 = vmatpush2.msra.mxu0 0.0
    %1532 = vmatprep.subr.mxu0 0.0
    %1533 = vmatpush2.msra.mxu0 0.0
    %1534 = vmatprep.subr.mxu0 0.0
    %1535 = vmatpush2.msra.mxu0 0.0
    %1536 = vmatprep.subr.mxu0 0.0
    %1537 = vmatpush2.msra.mxu0 0.0
    %1538 = vmatprep.subr.mxu0 0.0
    %1539 = vmatpush2.msra.mxu0 0.0
    %1540 = vmatprep.subr.mxu0 0.0
    %1541 = vmatpush2.msra.mxu0 0.0
    %1542 = vmatprep.subr.mxu0 0.0
    %1543 = vmatpush2.msra.mxu0 0.0
    %1544 = vmatprep.subr.mxu0 0.0
    %1545 = vmatpush2.msra.mxu0 0.0
    %1546 = vmatprep.subr.mxu0 0.0
    %1547 = vmatpush2.msra.mxu0 0.0
    %1548 = vmatprep.subr.mxu0 0.0
    %1549 = vmatpush2.msra.mxu0 0.0
    %1550 = vmatprep.subr.mxu0 0.0
    %1551 = vmatpush2.msra.mxu0 0.0
    %1552 = vmatprep.mubr.f32.mxu0 0.0
    %1553 = vmatmul.mubr.f32.gmra.mxu0 %v1416
    %v1554 = vpop.f32.mrf.mxu0
    %v1555 = vadd.f32 0.0, %v1554
    %v1556 = vpop.f32.mrf.mxu0
    %v1557 = vadd.f32 0.0, %v1556
    %1558 = vdwg.mxu0
    %v1559 = vadd.f32 %v210, %v1484
    %v1560 = vadd.f32 %v212, %v1486
    %v1561 = vadd.f32 %v323, %v1555
    %v1562 = vadd.f32 %v325, %v1557
    %v1563 = vxor.u32 %v1559, 2147483648
    %v1564 = vxor.u32 %v1560, 2147483648
    %v1565 = vxor.u32 %v1561, 2147483648
    %v1566 = vmul.f32 %v1563, 1.442695
    %v1567 = vpow.pop %v1566
    %v1568 = vmul.f32 %v1564, 1.442695
    %v1569 = vpow.pop %v1568
    %v1570 = vmul.f32 %v1565, 1.442695
    %v1571 = vpow.pop %v1570
    %v1572 = vadd.f32 %v1567, 1.0
    %v1573 = vadd.f32 %v1569, 1.0
    %v1574 = vadd.f32 %v1571, 1.0
    %v1575 = vrcp.pop %v1572
    %v1576 = vmul.f32 1.0, %v1575
    %v1577 = vrcp.pop %v1573
    %v1578 = vmul.f32 1.0, %v1577
    %v1579 = vrcp.pop %v1574
    %v1580 = vmul.f32 1.0, %v1579
    %v1581 = vtanh.pop %v1562
    %v1582 = vmul.f32 %v1578, %v1414
    %v1583 = vmul.f32 %v1576, %v1581
    %v1584 = vadd.f32 %v1582, %v1583
    %v1585 = vtanh.pop %v1584
    %v1586 = vmul.f32 %v1580, %v1585
    %1587 = vmatprep.subr.mxu0 %v394
    %1588 = vmatpush1.msra.mxu0 %v393
    %1589 = vmatprep.subr.mxu0 %v390
    %1590 = vmatpush1.msra.mxu0 %v389
    %1591 = vmatprep.subr.mxu0 %v386
    %1592 = vmatpush1.msra.mxu0 %v385
    %1593 = vmatprep.subr.mxu0 %v382
    %1594 = vmatpush1.msra.mxu0 %v381
    %1595 = vmatprep.subr.mxu0 %v378
    %1596 = vmatpush1.msra.mxu0 %v377
    %1597 = vmatprep.subr.mxu0 %v374
    %1598 = vmatpush1.msra.mxu0 %v373
    %1599 = vmatprep.subr.mxu0 %v370
    %1600 = vmatpush1.msra.mxu0 %v369
    %1601 = vmatprep.subr.mxu0 %v366
    %1602 = vmatpush1.msra.mxu0 %v365
    %1603 = vmatprep.subr.mxu0 %v362
    %1604 = vmatpush1.msra.mxu0 %v361
    %1605 = vmatprep.subr.mxu0 %v358
    %1606 = vmatpush1.msra.mxu0 %v357
    %1607 = vmatprep.subr.mxu0 %v354
    %1608 = vmatpush1.msra.mxu0 %v353
    %1609 = vmatprep.subr.mxu0 %v350
    %1610 = vmatpush1.msra.mxu0 %v349
    %1611 = vmatprep.subr.mxu0 %v346
    %1612 = vmatpush1.msra.mxu0 %v345
    %1613 = vmatprep.subr.mxu0 %v342
    %1614 = vmatpush1.msra.mxu0 %v341
    %1615 = vmatprep.subr.mxu0 %v338
    %1616 = vmatpush1.msra.mxu0 %v337
    %1617 = vmatprep.subr.mxu0 %v334
    %1618 = vmatpush1.msra.mxu0 %v333
    %1619 = vmatprep.subr.mxu0 0.0
    %1620 = vmatpush2.msra.mxu0 0.0
    %1621 = vmatprep.subr.mxu0 0.0
    %1622 = vmatpush2.msra.mxu0 0.0
    %1623 = vmatprep.subr.mxu0 0.0
    %1624 = vmatpush2.msra.mxu0 0.0
    %1625 = vmatprep.subr.mxu0 0.0
    %1626 = vmatpush2.msra.mxu0 0.0
    %1627 = vmatprep.subr.mxu0 0.0
    %1628 = vmatpush2.msra.mxu0 0.0
    %1629 = vmatprep.subr.mxu0 0.0
    %1630 = vmatpush2.msra.mxu0 0.0
    %1631 = vmatprep.subr.mxu0 0.0
    %1632 = vmatpush2.msra.mxu0 0.0
    %1633 = vmatprep.subr.mxu0 0.0
    %1634 = vmatpush2.msra.mxu0 0.0
    %1635 = vmatprep.subr.mxu0 0.0
    %1636 = vmatpush2.msra.mxu0 0.0
    %1637 = vmatprep.subr.mxu0 0.0
    %1638 = vmatpush2.msra.mxu0 0.0
    %1639 = vmatprep.subr.mxu0 0.0
    %1640 = vmatpush2.msra.mxu0 0.0
    %1641 = vmatprep.subr.mxu0 0.0
    %1642 = vmatpush2.msra.mxu0 0.0
    %1643 = vmatprep.subr.mxu0 0.0
    %1644 = vmatpush2.msra.mxu0 0.0
    %1645 = vmatprep.subr.mxu0 0.0
    %1646 = vmatpush2.msra.mxu0 0.0
    %1647 = vmatprep.subr.mxu0 0.0
    %1648 = vmatpush2.msra.mxu0 0.0
    %1649 = vmatprep.subr.mxu0 0.0
    %1650 = vmatpush2.msra.mxu0 0.0
    %1651 = vmatprep.mubr.f32.mxu0 0.0
    %1652 = vmatmul.mubr.f32.gmra.mxu0 %v1586
    %v1653 = vpop.f32.mrf.mxu0
    %v1654 = vadd.f32 0.0, %v1653
    %v1655 = vpop.f32.mrf.mxu0
    %v1656 = vadd.f32 0.0, %v1655
    %1657 = vdwg.mxu0
    %1658 = vmatprep.subr.mxu0 %v396
    %1659 = vmatpush1.msra.mxu0 %v395
    %1660 = vmatprep.subr.mxu0 %v392
    %1661 = vmatpush1.msra.mxu0 %v391
    %1662 = vmatprep.subr.mxu0 %v388
    %1663 = vmatpush1.msra.mxu0 %v387
    %1664 = vmatprep.subr.mxu0 %v384
    %1665 = vmatpush1.msra.mxu0 %v383
    %1666 = vmatprep.subr.mxu0 %v380
    %1667 = vmatpush1.msra.mxu0 %v379
    %1668 = vmatprep.subr.mxu0 %v376
    %1669 = vmatpush1.msra.mxu0 %v375
    %1670 = vmatprep.subr.mxu0 %v372
    %1671 = vmatpush1.msra.mxu0 %v371
    %1672 = vmatprep.subr.mxu0 %v368
    %1673 = vmatpush1.msra.mxu0 %v367
    %1674 = vmatprep.subr.mxu0 %v364
    %1675 = vmatpush1.msra.mxu0 %v363
    %1676 = vmatprep.subr.mxu0 %v360
    %1677 = vmatpush1.msra.mxu0 %v359
    %1678 = vmatprep.subr.mxu0 %v356
    %1679 = vmatpush1.msra.mxu0 %v355
    %1680 = vmatprep.subr.mxu0 %v352
    %1681 = vmatpush1.msra.mxu0 %v351
    %1682 = vmatprep.subr.mxu0 %v348
    %1683 = vmatpush1.msra.mxu0 %v347
    %1684 = vmatprep.subr.mxu0 %v344
    %1685 = vmatpush1.msra.mxu0 %v343
    %1686 = vmatprep.subr.mxu0 %v340
    %1687 = vmatpush1.msra.mxu0 %v339
    %1688 = vmatprep.subr.mxu0 %v336
    %1689 = vmatpush1.msra.mxu0 %v335
    %1690 = vmatprep.subr.mxu0 0.0
    %1691 = vmatpush2.msra.mxu0 0.0
    %1692 = vmatprep.subr.mxu0 0.0
    %1693 = vmatpush2.msra.mxu0 0.0
    %1694 = vmatprep.subr.mxu0 0.0
    %1695 = vmatpush2.msra.mxu0 0.0
    %1696 = vmatprep.subr.mxu0 0.0
    %1697 = vmatpush2.msra.mxu0 0.0
    %1698 = vmatprep.subr.mxu0 0.0
    %1699 = vmatpush2.msra.mxu0 0.0
    %1700 = vmatprep.subr.mxu0 0.0
    %1701 = vmatpush2.msra.mxu0 0.0
    %1702 = vmatprep.subr.mxu0 0.0
    %1703 = vmatpush2.msra.mxu0 0.0
    %1704 = vmatprep.subr.mxu0 0.0
    %1705 = vmatpush2.msra.mxu0 0.0
    %1706 = vmatprep.subr.mxu0 0.0
    %1707 = vmatpush2.msra.mxu0 0.0
    %1708 = vmatprep.subr.mxu0 0.0
    %1709 = vmatpush2.msra.mxu0 0.0
    %1710 = vmatprep.subr.mxu0 0.0
    %1711 = vmatpush2.msra.mxu0 0.0
    %1712 = vmatprep.subr.mxu0 0.0
    %1713 = vmatpush2.msra.mxu0 0.0
    %1714 = vmatprep.subr.mxu0 0.0
    %1715 = vmatpush2.msra.mxu0 0.0
    %1716 = vmatprep.subr.mxu0 0.0
    %1717 = vmatpush2.msra.mxu0 0.0
    %1718 = vmatprep.subr.mxu0 0.0
    %1719 = vmatpush2.msra.mxu0 0.0
    %1720 = vmatprep.subr.mxu0 0.0
    %1721 = vmatpush2.msra.mxu0 0.0
    %1722 = vmatprep.mubr.f32.mxu0 0.0
    %1723 = vmatmul.mubr.f32.gmra.mxu0 %v1586
    %v1724 = vpop.f32.mrf.mxu0
    %v1725 = vadd.f32 0.0, %v1724
    %v1726 = vpop.f32.mrf.mxu0
    %v1727 = vadd.f32 0.0, %v1726
    %1728 = vdwg.mxu0
    %v1729 = vadd.f32 %v216, %v1654
    %v1730 = vadd.f32 %v218, %v1656
    %v1731 = vadd.f32 %v329, %v1725
    %v1732 = vadd.f32 %v331, %v1727
    %v1733 = vxor.u32 %v1729, 2147483648
    %v1734 = vxor.u32 %v1730, 2147483648
    %v1735 = vxor.u32 %v1731, 2147483648
    %v1736 = vmul.f32 %v1733, 1.442695
    %v1737 = vpow.pop %v1736
    %v1738 = vmul.f32 %v1734, 1.442695
    %v1739 = vpow.pop %v1738
    %v1740 = vmul.f32 %v1735, 1.442695
    %v1741 = vpow.pop %v1740
    %v1742 = vadd.f32 %v1737, 1.0
    %v1743 = vadd.f32 %v1739, 1.0
    %v1744 = vadd.f32 %v1741, 1.0
    %v1745 = vrcp.pop %v1742
    %v1746 = vmul.f32 1.0, %v1745
    %v1747 = vrcp.pop %v1743
    %v1748 = vmul.f32 1.0, %v1747
    %v1749 = vrcp.pop %v1744
    %v1750 = vmul.f32 1.0, %v1749
    %v1751 = vtanh.pop %v1732
    %v1752 = vmul.f32 %v1748, %v1584
    %v1753 = vmul.f32 %v1746, %v1751
    %v1754 = vadd.f32 %v1752, %v1753
    %v1755 = vtanh.pop %v1754
    %v1756 = vmul.f32 %v1750, %v1755
    %1757 = vst [vmem:[#allocation5] sm:$0x3] %v1756
    %1758 = vst [vmem:[#allocation6] sm:$0x3] %v1754
    // Predicated region
    $region22: #{tpu_custom_call.1} parent=1 // pred_check
      _
    $region23: #{tpu_custom_call.1} parent=1 // pred_check_branch
      %1760 = sbr.rel (0) target = $region25
    $region24: #{tpu_custom_call.1} parent=1 // pred_region
      %s1762 = ssub.s32 32, 32
      %1763 = vsyncadd [#allocation4], %s1762
      %s1765 = sshll.u32 [#allocation5], 4
      %s1766 = int_to_ptr.vmem [resolvable:$true] %s1765
      %1768 = dma.vmem_to_hbm [thread:$0]  %s1766, 32, %s4, [#allocation4]
    $region25: #{tpu_custom_call.1} parent=1 // pred_fallthru
      _
    // Predicated region
    $region26: #{tpu_custom_call.1} parent=1 // pred_check
      _
    $region27: #{tpu_custom_call.1} parent=1 // pred_check_branch
      %1770 = sbr.rel (0) target = $region29
    $region28: #{tpu_custom_call.1} parent=1 // pred_region
      %s1772 = ssub.s32 32, 32
      %1773 = vsyncadd [#allocation7], %s1772
      %s1775 = sshll.u32 [#allocation6], 4
      %s1776 = int_to_ptr.vmem [resolvable:$true] %s1775
      %1778 = dma.vmem_to_hbm [thread:$0]  %s1776, 32, %s5, [#allocation7]
    $region29: #{tpu_custom_call.1} parent=1 // pred_fallthru
      _
    // Predicated region
    $region30: #{tpu_custom_call.1} parent=1 // pred_check
      _
    $region31: #{tpu_custom_call.1} parent=1 // pred_check_branch
      %1780 = sbr.rel (0) target = $region33
    $region32: #{tpu_custom_call.1} parent=1 // pred_region
      %1781 = dma.done [#allocation4], 32
    $region33: #{tpu_custom_call.1} parent=1 // pred_fallthru
      _
    // Predicated region
    $region34: #{tpu_custom_call.1} parent=1 // pred_check
      _
    $region35: #{tpu_custom_call.1} parent=1 // pred_check_branch
      %1783 = sbr.rel (0) target = $region37
    $region36: #{tpu_custom_call.1} parent=1 // pred_region
      %1784 = dma.done [#allocation7], 32
    $region37: #{tpu_custom_call.1} parent=1 // pred_fallthru
      _
    %1785 = vsyncpa [#allocation3], 1
    %1786 = vsyncpa [#allocation4], 1
    %1787 = vsyncpa [#allocation7], 1

</llo_original>
